<compile_context>
chip_gen: v6e
topology: v6e:2x2x1
jax: 0.10.0
libtpu: 0.0.40
codegen_flags: <defaults>
</compile_context>

<pallas_src>
import functools

import jax
import jax.numpy as jnp
import numpy as np
from jax.experimental import pallas as pl
from jax.experimental.pallas import tpu as pltpu


# Conservative per-kernel VMEM budget: v7x has only 64 MiB of VMEM per
# TensorCore (v5e/v6e have 128 MiB physical, 16/32 MiB default scoped), so
# size the pipeline against ~48 MiB and raise the scoped limit to match.
_VMEM_BUDGET_BYTES = 48 * 1024 * 1024


def _round_up(x, m):
    return ((x + m - 1) // m) * m


def _sine_layer_kernel(x_ref, w_ref, b_ref, o_ref, *, omega_0):
    # MXU matmul with f32 accumulation; bias add + omega scale + sin fused.
    acc = jnp.dot(x_ref[...], w_ref[...], preferred_element_type=jnp.float32)
    o_ref[...] = jnp.sin(omega_0 * (acc + b_ref[...])).astype(o_ref.dtype)


def sine_layer(x, w, b, omega_0=30.0, *, tm=512, prefer_bf16=False):
    """Fused SIREN sine layer: returns sin(omega_0 * (x @ w.T + b)).

    x: [N, in_f]        activations
    w: [out_f, in_f]    weight, PyTorch nn.Linear layout
    b: [out_f]          bias
    """
    N, in_f = x.shape
    out_f, in_f2 = w.shape
    assert in_f == in_f2, "weight must be [out_features, in_features]"
    out_dtype = x.dtype
    omega_0 = float(omega_0)

    # One-time layout transform outside the kernel. (In a real model, store the
    # weight pre-transposed once instead of transposing every call.)
    w_t = w.T  # [in_f, out_f]

    # --- feature padding for layout efficiency ------------------------------
    in_p = _round_up(in_f, 8)      # sublane alignment for K
    out_p = _round_up(out_f, 128)  # lane-dense output stores (no vst.msk)
    if in_p != in_f:
        x = jnp.pad(x, ((0, 0), (0, in_p - in_f)))
        w_t = jnp.pad(w_t, ((0, in_p - in_f), (0, 0)))
    if out_p != out_f:
        w_t = jnp.pad(w_t, ((0, 0), (0, out_p - out_f)))
        b = jnp.pad(b, (0, out_p - out_f))
    b2 = b.astype(jnp.float32).reshape(1, out_p)  # added to the f32 accumulator

    # Optional bf16 matmul path (halves HBM traffic for x/W, MXU-native on
    # v6e/v7x; accumulation stays f32). Elementwise tail stays f32 everywhere.
    if prefer_bf16 and x.dtype == jnp.float32:
        x = x.astype(jnp.bfloat16)
        w_t = w_t.astype(jnp.bfloat16)

    x_isz = jnp.dtype(x.dtype).itemsize
    w_isz = jnp.dtype(w_t.dtype).itemsize
    o_isz = jnp.dtype(out_dtype).itemsize

    # --- row tile selection --------------------------------------------------
    tm = max(8, min(_round_up(tm, 8), _round_up(N, 8)))
    # Keep >= 2 grid steps when the batch allows it so both v7x TensorCores
    # get work on the "parallel" axis (no effect on v5e/v6e).
    if N >= 256 and pl.cdiv(N, tm) < 2:
        tm = _round_up(pl.cdiv(N, 2), 8)

    def _vmem_bytes(tm_):
        return (2 * tm_ * in_p * x_isz          # x tile, double-buffered
                + in_p * out_p * w_isz          # resident W, single buffer
                + 8 * out_p * 4                 # resident bias (sublane-padded)
                + 2 * tm_ * out_p * o_isz)      # out tile, double-buffered

    while _vmem_bytes(tm) > _VMEM_BUDGET_BYTES and tm > 64:
        tm = _round_up(tm // 2, 8)

    n_pad = _round_up(N, tm)
    if n_pad != N:
        x = jnp.pad(x, ((0, n_pad - N), (0, 0)))
    grid = (n_pad // tm,)

    cost = pl.CostEstimate(
        flops=2 * n_pad * in_p * out_p,
        transcendentals=n_pad * out_p,
        bytes_accessed=(n_pad * in_p * x_isz + in_p * out_p * w_isz
                        + out_p * 4 + n_pad * out_p * o_isz),
    )

    kernel = functools.partial(_sine_layer_kernel, omega_0=omega_0)

    out = pl.pallas_call(
        kernel,
        out_shape=jax.ShapeDtypeStruct((n_pad, out_p), out_dtype),
        grid_spec=pl.GridSpec(
            grid=grid,
            in_specs=[
                pl.BlockSpec((tm, in_p), lambda i: (i, 0)),
                # W and bias are grid-invariant: single-buffer them so wide
                # layers don't pay 2x VMEM for a buffer that never refills.
                pl.BlockSpec((in_p, out_p), lambda i: (0, 0),
                             pipeline_mode=pl.Buffered(1)),
                pl.BlockSpec((1, out_p), lambda i: (0, 0),
                             pipeline_mode=pl.Buffered(1)),
            ],
            out_specs=pl.BlockSpec((tm, out_p), lambda i: (i, 0)),
        ),
        compiler_params=pltpu.CompilerParams(
            dimension_semantics=("parallel",),
            vmem_limit_bytes=_VMEM_BUDGET_BYTES,
        ),
        cost_estimate=cost,
    )(x, w_t, b2)

    return out[:N, :out_f]


def init_sine_layer_params(key, in_features, out_features, *, is_first=False,
                           omega_0=30.0, dtype=jnp.float32):
    """SIREN init matching SineLayer.init_weights(); returns (w, b) in
    PyTorch layout (w: [out_features, in_features], b: [out_features])."""
    kw, kb = jax.random.split(key)
    if is_first:
        bound_w = 1.0 / in_features
    else:
        bound_w = float(np.sqrt(6.0 / in_features) / omega_0)
    w = jax.random.uniform(kw, (out_features, in_features), dtype,
                           minval=-bound_w, maxval=bound_w)
    bound_b = 1.0 / float(np.sqrt(in_features))  # nn.Linear default bias init
    b = jax.random.uniform(kb, (out_features,), dtype,
                           minval=-bound_b, maxval=bound_b)
    return w, b


if __name__ == "__main__":
    key = jax.random.PRNGKey(0)
    k_x, k_p = jax.random.split(key)

    # Small SIREN layer: 256 coordinate samples, 32 -> 64 features.
    N, in_features, out_features = 256, 32, 64
    omega_0, is_first = 30.0, True

    x = jax.random.uniform(k_x, (N, in_features), jnp.float32,
                           minval=-1.0, maxval=1.0)
    w, b = init_sine_layer_params(k_p, in_features, out_features,
                                  is_first=is_first, omega_0=omega_0)

    out = jax.block_until_ready(sine_layer(x, w, b, omega_0))

    # Reference with the exact PyTorch operation order:
    # sin(omega_0 * (x @ W^T + b))
    ref = jnp.sin(omega_0 * (x @ w.T + b[None, :]))
    np.testing.assert_allclose(np.asarray(out), np.asarray(ref),
                               rtol=1e-4, atol=1e-4)

    print("KERNEL_OK")
</pallas_src>

<mosaic_0001>
module attributes {stable_mosaic.version = 11 : i64} {
  func.func @_sine_layer_kernel(%arg0: i32, %arg1: memref<128x32xf32, #tpu.memory_space<vmem>>, %arg2: memref<32x128xf32, #tpu.memory_space<vmem>>, %arg3: memref<1x128xf32, #tpu.memory_space<vmem>>, %arg4: memref<128x128xf32, #tpu.memory_space<vmem>>) attributes {dimension_semantics = [#tpu.dimension_semantics<parallel>], iteration_bounds = array<i64: 2>, scalar_prefetch = 0 : i64, scratch_operands = 0 : i64, tpu.core_type = #tpu.core_type<tc>, window_params = [{transform_indices = @transform_0, window_bounds = array<i64: 128, 32>}, {pipeline_mode = #tpu.pipeline_mode<synchronous>, transform_indices = @transform_1, window_bounds = array<i64: 32, 128>}, {pipeline_mode = #tpu.pipeline_mode<synchronous>, transform_indices = @transform_2, window_bounds = array<i64: 1, 128>}, {transform_indices = @transform_3, window_bounds = array<i64: 128, 128>}]} {
    %c0 = arith.constant 0 : index
    %c0_0 = arith.constant 0 : index
    %0 = vector.load %arg1[%c0, %c0_0] : memref<128x32xf32, #tpu.memory_space<vmem>>, vector<128x32xf32>
    %c0_1 = arith.constant 0 : index
    %c0_2 = arith.constant 0 : index
    %1 = vector.load %arg2[%c0_1, %c0_2] : memref<32x128xf32, #tpu.memory_space<vmem>>, vector<32x128xf32>
    %cst = arith.constant dense<0.000000e+00> : vector<128x128xf32>
    %2 = tpu.matmul %0, %1, %cst {dimension_numbers = #tpu.dot_dimension_numbers<[1], [0], [0], [1], [0, 0, 1, 1], [], []>} : vector<128x32xf32>, vector<32x128xf32>, vector<128x128xf32> -> vector<128x128xf32>
    %c0_3 = arith.constant 0 : index
    %c0_4 = arith.constant 0 : index
    %3 = vector.load %arg3[%c0_3, %c0_4] : memref<1x128xf32, #tpu.memory_space<vmem>>, vector<1x128xf32>
    %4 = vector.broadcast %3 : vector<1x128xf32> to vector<128x128xf32>
    %5 = arith.addf %2, %4 : vector<128x128xf32>
    %cst_5 = arith.constant 3.000000e+01 : f32
    %6 = vector.broadcast %cst_5 : f32 to vector<128x128xf32>
    %7 = arith.mulf %6, %5 : vector<128x128xf32>
    %8 = math.sin %7 : vector<128x128xf32>
    %c0_6 = arith.constant 0 : index
    %c0_7 = arith.constant 0 : index
    %9 = vector.load %arg4[%c0_6, %c0_7] : memref<128x128xf32, #tpu.memory_space<vmem>>, vector<128x128xf32>
    tpu.vector_store %arg4[%c0_6, %c0_7], %8 {strides = array<i32>} : memref<128x128xf32, #tpu.memory_space<vmem>>, vector<128x128xf32>,
    return
  }
  func.func @transform_0(%arg0: i32) -> (i32, i32) {
    %c0_i32 = arith.constant 0 : i32
    %c0_i32_0 = arith.constant 0 : i32
    return %arg0, %c0_i32 : i32, i32
  }
  func.func @transform_1(%arg0: i32) -> (i32, i32) {
    %c0_i32 = arith.constant 0 : i32
    %c0_i32_0 = arith.constant 0 : i32
    %c0_i32_1 = arith.constant 0 : i32
    return %c0_i32, %c0_i32_0 : i32, i32
  }
  func.func @transform_2(%arg0: i32) -> (i32, i32) {
    %c0_i32 = arith.constant 0 : i32
    %c0_i32_0 = arith.constant 0 : i32
    %c0_i32_1 = arith.constant 0 : i32
    return %c0_i32, %c0_i32_0 : i32, i32
  }
  func.func @transform_3(%arg0: i32) -> (i32, i32) {
    %c0_i32 = arith.constant 0 : i32
    %c0_i32_0 = arith.constant 0 : i32
    return %arg0, %c0_i32 : i32, i32
  }
}

</mosaic_0001>

<llo_original>
// kernel: tpu_custom_call.1
$region0: #{tpu_custom_call.1}
  #allocation0 [shape = 'u32[]', space=smem, size = 0x4, offset = 0x4, fixed_abs, tag = 'smem constant byte address 0x4 - core index']
  #allocation1 [shape = 'u32[144,128]{1,0:T(1,128)}', space=vmem, size = 0x12000, scoped, tag = 'internal scratch']
  %s0 = inlined_call_operand.vmem [shape: f32[256,32], index: 0, kind: input, shape index: {}]
  %s1 = inlined_call_operand.vmem [shape: f32[32,128], index: 1, kind: input, shape index: {}]
  %s2 = inlined_call_operand.vmem [shape: f32[1,128], index: 2, kind: input, shape index: {}]
  %s3 = inlined_call_operand.hbm [shape: f32[256,128], index: 3, kind: output, shape index: {}]
  %s4 = sld [smem:[#allocation0]]
  $region45: #{tpu_custom_call.1} parent=0
    _
  %s6 = ssub.s32 1, %s4
  %s7 = scalar_select 0, %s6, %s4
  $region1: #{tpu_custom_call.1} parent=0
    #allocation2 [shape = 'u8[131072]{0}', space=vmem, size = 0x20000, scoped, tag = 'output window, operand 0']
    #allocation3 [shape = 's32[2]{0}', space=sflag, size = 0x8, scoped, tag = 'scoped memory for tpu_custom_call.1']
    %8 = vsyncpa [#allocation3], 0
    %s9 = scalar_lea.sflag [#allocation3], 1
    %10 = vsyncpa %s9, 0
    loop: start=0, step=1, limit=4
    $region2: #{tpu_custom_call.1} parent=1 // loop_pre_header
      _
    $region3: #{tpu_custom_call.1} parent=1 // loop_header
      %s12 = sphi 0, %s16
      %p13 = scmp.ge.s32.totalorder %s12, 4
      %s22 = sphi 0, %s24
      %s25 = sphi 0, %s22
      %s26 = sphi 0, %s25
      %s42 = sphi 0, %s26
      %s46 = sphi 0, %s46
      %s48 = sphi 0, %s46
      %s49 = sphi 0, %s48
      %s63 = sphi 0, %s49
      %s67 = sphi 0, %s67
      %s69 = sphi 0, %s67
      %s70 = sphi 0, %s69
      %s84 = sphi 0, %s70
      %s90 = sphi 0, %s92
      %s93 = sphi 0, %s90
      %s94 = sphi 0, %s93
      %s110 = sphi 0, %s94
    $region4: #{tpu_custom_call.1} parent=1 // loop_header_branch
      %15 = sbr.rel (%p13) target = $region8
    $region5: #{tpu_custom_call.1} parent=1 // loop_body
      %s17 = ssub.s32 %s12, 1
      %s18 = ssub.s32 %s12, 2
      %s19 = sadd.s32 %s12, 1
      %s20 = ssub.s32 %s12, %s19
      %p21 = scmp.eq.s32.totalorder %s20, 0
      %s23 = sadd.s32 %s22, 1
      %s24 = scalar_select %p21, %s22, %s23
      %p27 = pneg %p21
      %p28 = scmp.eq.s32.totalorder %s12, 1
      %p29 = por %p27, %p28
      %p30 = scmp.ne.s32.totalorder %s22, %s25
      %p31 = scmp.eq.s32.totalorder %s12, 0
      %p32 = por %p30, %p31
      %p33 = scmp.ne.s32.totalorder %s22, %s25
      %p34 = scmp.eq.s32.totalorder %s17, 1
      %p35 = por %p33, %p34
      %p36 = scmp.ne.s32.totalorder %s25, %s26
      %p37 = scmp.eq.s32.totalorder %s17, 0
      %p38 = por %p36, %p37
      %p39 = scmp.ne.s32.totalorder %s25, %s26
      %p40 = scmp.eq.s32.totalorder %s18, 1
      %p41 = por %p39, %p40
      %p43 = scmp.ne.s32.totalorder %s26, %s42
      %p44 = scmp.eq.s32.totalorder %s18, 0
      %p45 = por %p43, %p44
      %s47 = sadd.s32 %s46, 1
      %p50 = scmp.eq.s32.totalorder %s12, 1
      %p51 = scmp.ne.s32.totalorder %s46, %s48
      %p52 = scmp.eq.s32.totalorder %s12, 0
      %p53 = por %p51, %p52
      %p54 = scmp.ne.s32.totalorder %s46, %s48
      %p55 = scmp.eq.s32.totalorder %s17, 1
      %p56 = por %p54, %p55
      %p57 = scmp.ne.s32.totalorder %s48, %s49
      %p58 = scmp.eq.s32.totalorder %s17, 0
      %p59 = por %p57, %p58
      %p60 = scmp.ne.s32.totalorder %s48, %s49
      %p61 = scmp.eq.s32.totalorder %s18, 1
      %p62 = por %p60, %p61
      %p64 = scmp.ne.s32.totalorder %s49, %s63
      %p65 = scmp.eq.s32.totalorder %s18, 0
      %p66 = por %p64, %p65
      %s68 = sadd.s32 %s67, 1
      %p71 = scmp.eq.s32.totalorder %s12, 1
      %p72 = scmp.ne.s32.totalorder %s67, %s69
      %p73 = scmp.eq.s32.totalorder %s12, 0
      %p74 = por %p72, %p73
      %p75 = scmp.ne.s32.totalorder %s67, %s69
      %p76 = scmp.eq.s32.totalorder %s17, 1
      %p77 = por %p75, %p76
      %p78 = scmp.ne.s32.totalorder %s69, %s70
      %p79 = scmp.eq.s32.totalorder %s17, 0
      %p80 = por %p78, %p79
      %p81 = scmp.ne.s32.totalorder %s69, %s70
      %p82 = scmp.eq.s32.totalorder %s18, 1
      %p83 = por %p81, %p82
      %p85 = scmp.ne.s32.totalorder %s70, %s84
      %p86 = scmp.eq.s32.totalorder %s18, 0
      %p87 = por %p85, %p86
      %s88 = ssub.s32 %s12, %s19
      %p89 = scmp.eq.s32.totalorder %s88, 0
      %s91 = sadd.s32 %s90, 1
      %s92 = scalar_select %p89, %s90, %s91
      %p95 = pneg %p89
      %p96 = scmp.eq.s32.totalorder %s12, 1
      %p97 = por %p95, %p96
      %p98 = scmp.ne.s32.totalorder %s90, %s93
      %p99 = scmp.eq.s32.totalorder %s12, 0
      %p100 = por %p98, %p99
      %p101 = scmp.ne.s32.totalorder %s90, %s93
      %p102 = scmp.eq.s32.totalorder %s17, 1
      %p103 = por %p101, %p102
      %p104 = scmp.ne.s32.totalorder %s93, %s94
      %p105 = scmp.eq.s32.totalorder %s17, 0
      %p106 = por %p104, %p105
      %p107 = scmp.ne.s32.totalorder %s93, %s94
      %p108 = scmp.eq.s32.totalorder %s18, 1
      %p109 = por %p107, %p108
      %p111 = scmp.ne.s32.totalorder %s94, %s110
      %p112 = scmp.eq.s32.totalorder %s18, 0
      %p113 = por %p111, %p112
      %p114 = scmp.le.s32.totalorder 1, %s12
      %p115 = scmp.lt.s32.totalorder %s12, 3
      %p116 = pnand %p114, %p115
      %p117 = pneg %p116
      // Predicated region
      $region9: #{tpu_custom_call.1} parent=5 // pred_check
        _
      $region10: #{tpu_custom_call.1} parent=5 // pred_check_branch
        %119 = sbr.rel (%p116) target = $region12
      $region11: #{tpu_custom_call.1} parent=5 // pred_region
        %s120 = ssub.s32 %s12, 1
        // Predicated region
        $region13: #{tpu_custom_call.1} parent=11 // pred_check
          %p121 = pneg %p59
        $region14: #{tpu_custom_call.1} parent=11 // pred_check_branch
          %123 = sbr.rel (%p121) target = $region16
        $region15: #{tpu_custom_call.1} parent=11 // pred_region
          _
        $region16: #{tpu_custom_call.1} parent=11 // pred_fallthru
          _
        // Predicated region
        $region17: #{tpu_custom_call.1} parent=11 // pred_check
          %p124 = pneg %p80
        $region18: #{tpu_custom_call.1} parent=11 // pred_check_branch
          %126 = sbr.rel (%p124) target = $region20
        $region19: #{tpu_custom_call.1} parent=11 // pred_region
          _
        $region20: #{tpu_custom_call.1} parent=11 // pred_fallthru
          _
      $region12: #{tpu_custom_call.1} parent=5 // pred_fallthru
        _
      %p127 = scmp.lt.s32.totalorder %s12, 2
      // Predicated region
      $region21: #{tpu_custom_call.1} parent=5 // pred_check
        %p128 = pneg %p127
      $region22: #{tpu_custom_call.1} parent=5 // pred_check_branch
        %130 = sbr.rel (%p128) target = $region24
      $region23: #{tpu_custom_call.1} parent=5 // pred_region
        // Predicated region
        $region25: #{tpu_custom_call.1} parent=23 // pred_check
          %p131 = pneg %p32
        $region26: #{tpu_custom_call.1} parent=23 // pred_check_branch
          %133 = sbr.rel (%p131) target = $region28
        $region27: #{tpu_custom_call.1} parent=23 // pred_region
          %s134 = smul.u32 16, %s12
          %p135 = scmp.lt.s32.totalorder %s134, 31
          %s136 = scalar_select %p135, %s134, 31
          %s137 = smul.addr %s136, 8
          %s138 = scalar_lea.vmem %s0, %s137
          %s139 = smul.u32 16, %s12
        $region28: #{tpu_custom_call.1} parent=23 // pred_fallthru
          _
      $region24: #{tpu_custom_call.1} parent=5 // pred_fallthru
        _
      %p140 = scmp.le.s32.totalorder 1, %s12
      %p141 = scmp.lt.s32.totalorder %s12, 3
      %p142 = pnand %p140, %p141
      %p143 = pneg %p142
      // Predicated region
      $region29: #{tpu_custom_call.1} parent=5 // pred_check
        _
      $region30: #{tpu_custom_call.1} parent=5 // pred_check_branch
        %145 = sbr.rel (%p142) target = $region32
      $region31: #{tpu_custom_call.1} parent=5 // pred_region
        %s146 = ssub.s32 %s12, 1
        %s147 = smul.u32 16, %s17
        %p148 = scmp.lt.s32.totalorder %s147, 31
        %s149 = scalar_select %p148, %s147, 31
        %s150 = smul.addr %s149, 8
        %s151 = scalar_lea.vmem %s0, %s150
        %p152 = pneg %p38
        %p153 = pneg %p35
        %p154 = pneg %p59
        %p155 = pneg %p56
        %p156 = pneg %p80
        %p157 = pneg %p77
        %p158 = pneg %p106
        %p159 = pneg %p103
        %s160 = sand.u32 %s93, 1
        %s161 = scalar_lea.sflag [#allocation3], %s160
        %s162 = sand.u32 %s93, 1
        %s163 = smul.addr %s162, 128
        %s164 = scalar_lea.vmem [#allocation2], %s163
        %s165 = smul.u32 16, %s17
        %p166 = scmp.lt.s32.totalorder %s165, 31
        %s167 = scalar_select %p166, %s165, 31
        %s168 = smul.addr %s167, 8
        %s169 = scalar_lea.vmem %s0, %s168
        %s170 = smul.u32 16, %s17
        %s171 = smul.u32 16, %s17
        %v172 = vld [vmem:[%s169] sm:$0xff]
        %v173 = vld [vmem:[%s169 + $0x8] sm:$0xff]
        %v174 = vld [vmem:[%s169 + $0x10] sm:$0xff]
        %v175 = vld [vmem:[%s169 + $0x18] sm:$0xff]
        %v176 = vld [vmem:[%s169 + $0x20] sm:$0xff]
        %v177 = vld [vmem:[%s169 + $0x28] sm:$0xff]
        %v178 = vld [vmem:[%s169 + $0x30] sm:$0xff]
        %v179 = vld [vmem:[%s169 + $0x38] sm:$0xff]
        %v180 = vld [vmem:[%s169 + $0x40] sm:$0xff]
        %v181 = vld [vmem:[%s169 + $0x48] sm:$0xff]
        %v182 = vld [vmem:[%s169 + $0x50] sm:$0xff]
        %v183 = vld [vmem:[%s169 + $0x58] sm:$0xff]
        %v184 = vld [vmem:[%s169 + $0x60] sm:$0xff]
        %v185 = vld [vmem:[%s169 + $0x68] sm:$0xff]
        %v186 = vld [vmem:[%s169 + $0x70] sm:$0xff]
        %v187 = vld [vmem:[%s169 + $0x78] sm:$0xff]
        %v188 = vld [vmem:[%s1] sm:$0xff]
        %v189 = vld [vmem:[%s1 + $0x8] sm:$0xff]
        %v190 = vld [vmem:[%s1 + $0x10] sm:$0xff]
        %v191 = vld [vmem:[%s1 + $0x18] sm:$0xff]
        %v192 = vld [vmem:[%s2] sm:$0x1]
        %v194 = vlaneseq
        %v195 = vshrl.u32 %v194, 7
        %v196 = vsub.s32 0, %v195
        %v197 = vrot.slane %v192, %v196
        %vm199 = vcmask 261120
        %v201 = vsel %vm199, %v172, 0
        %v204 = vsel %vm199, %v173, 0
        %v207 = vsel %vm199, %v174, 0
        %v210 = vsel %vm199, %v175, 0
        %v213 = vsel %vm199, %v176, 0
        %v216 = vsel %vm199, %v177, 0
        %v219 = vsel %vm199, %v178, 0
        %v222 = vsel %vm199, %v179, 0
        %v225 = vsel %vm199, %v180, 0
        %v228 = vsel %vm199, %v181, 0
        %v231 = vsel %vm199, %v182, 0
        %v234 = vsel %vm199, %v183, 0
        %v237 = vsel %vm199, %v184, 0
        %v240 = vsel %vm199, %v185, 0
        %v243 = vsel %vm199, %v186, 0
        %v246 = vsel %vm199, %v187, 0
        %248 = vmatprep.subr.mxu0 0.0
        %249 = vmatpush1.msra.mxu0 0.0
        %250 = vmatprep.subr.mxu0 0.0
        %251 = vmatpush1.msra.mxu0 0.0
        %252 = vmatprep.subr.mxu0 0.0
        %253 = vmatpush1.msra.mxu0 0.0
        %254 = vmatprep.subr.mxu0 0.0
        %255 = vmatpush1.msra.mxu0 0.0
        %256 = vmatprep.subr.mxu0 0.0
        %257 = vmatpush1.msra.mxu0 0.0
        %258 = vmatprep.subr.mxu0 0.0
        %259 = vmatpush1.msra.mxu0 0.0
        %260 = vmatprep.subr.mxu0 0.0
        %261 = vmatpush1.msra.mxu0 0.0
        %262 = vmatprep.subr.mxu0 0.0
        %263 = vmatpush1.msra.mxu0 0.0
        %264 = vmatprep.subr.mxu0 0.0
        %265 = vmatpush1.msra.mxu0 0.0
        %266 = vmatprep.subr.mxu0 0.0
        %267 = vmatpush1.msra.mxu0 0.0
        %268 = vmatprep.subr.mxu0 0.0
        %269 = vmatpush1.msra.mxu0 0.0
        %270 = vmatprep.subr.mxu0 0.0
        %271 = vmatpush1.msra.mxu0 0.0
        %272 = vmatprep.subr.mxu0 0.0
        %273 = vmatpush1.msra.mxu0 %v191
        %274 = vmatprep.subr.mxu0 0.0
        %275 = vmatpush1.msra.mxu0 %v190
        %276 = vmatprep.subr.mxu0 0.0
        %277 = vmatpush1.msra.mxu0 %v189
        %278 = vmatprep.subr.mxu0 0.0
        %279 = vmatpush1.msra.mxu0 %v188
        %280 = vmatprep.subr.mxu0 0.0
        %281 = vmatpush2.msra.mxu0 0.0
        %282 = vmatprep.subr.mxu0 0.0
        %283 = vmatpush2.msra.mxu0 0.0
        %284 = vmatprep.subr.mxu0 0.0
        %285 = vmatpush2.msra.mxu0 0.0
        %286 = vmatprep.subr.mxu0 0.0
        %287 = vmatpush2.msra.mxu0 0.0
        %288 = vmatprep.subr.mxu0 0.0
        %289 = vmatpush2.msra.mxu0 0.0
        %290 = vmatprep.subr.mxu0 0.0
        %291 = vmatpush2.msra.mxu0 0.0
        %292 = vmatprep.subr.mxu0 0.0
        %293 = vmatpush2.msra.mxu0 0.0
        %294 = vmatprep.subr.mxu0 0.0
        %295 = vmatpush2.msra.mxu0 0.0
        %296 = vmatprep.subr.mxu0 0.0
        %297 = vmatpush2.msra.mxu0 0.0
        %298 = vmatprep.subr.mxu0 0.0
        %299 = vmatpush2.msra.mxu0 0.0
        %300 = vmatprep.subr.mxu0 0.0
        %301 = vmatpush2.msra.mxu0 0.0
        %302 = vmatprep.subr.mxu0 0.0
        %303 = vmatpush2.msra.mxu0 0.0
        %304 = vmatprep.subr.mxu0 0.0
        %305 = vmatpush2.msra.mxu0 0.0
        %306 = vmatprep.subr.mxu0 0.0
        %307 = vmatpush2.msra.mxu0 0.0
        %308 = vmatprep.subr.mxu0 0.0
        %309 = vmatpush2.msra.mxu0 0.0
        %310 = vmatprep.subr.mxu0 0.0
        %311 = vmatpush2.msra.mxu0 0.0
        %312 = vmatprep.mubr.f32.mxu0 0.0
        %313 = vmatmul.mubr.f32.gmra.mxu0 %v201
        %v314 = vpop.f32.mrf.mxu0
        %v315 = vadd.f32 %v197, %v314
        %v316 = vpop.f32.mrf.mxu0
        %317 = vmatprep.mubr.f32.mxu0 0.0
        %318 = vmatmul.mubr.f32.gmra.mxu0 %v204
        %v319 = vpop.f32.mrf.mxu0
        %v320 = vadd.f32 %v197, %v319
        %v321 = vpop.f32.mrf.mxu0
        %322 = vmatprep.mubr.f32.mxu0 0.0
        %323 = vmatmul.mubr.f32.gmra.mxu0 %v207
        %v324 = vpop.f32.mrf.mxu0
        %v325 = vadd.f32 %v197, %v324
        %v326 = vpop.f32.mrf.mxu0
        %327 = vmatprep.mubr.f32.mxu0 0.0
        %328 = vmatmul.mubr.f32.gmra.mxu0 %v210
        %v329 = vpop.f32.mrf.mxu0
        %v330 = vadd.f32 %v197, %v329
        %v331 = vpop.f32.mrf.mxu0
        %332 = vmatprep.mubr.f32.mxu0 0.0
        %333 = vmatmul.mubr.f32.gmra.mxu0 %v213
        %v334 = vpop.f32.mrf.mxu0
        %v335 = vadd.f32 %v197, %v334
        %v336 = vpop.f32.mrf.mxu0
        %337 = vmatprep.mubr.f32.mxu0 0.0
        %338 = vmatmul.mubr.f32.gmra.mxu0 %v216
        %v339 = vpop.f32.mrf.mxu0
        %v340 = vadd.f32 %v197, %v339
        %v341 = vpop.f32.mrf.mxu0
        %342 = vmatprep.mubr.f32.mxu0 0.0
        %343 = vmatmul.mubr.f32.gmra.mxu0 %v219
        %v344 = vpop.f32.mrf.mxu0
        %v345 = vadd.f32 %v197, %v344
        %v346 = vpop.f32.mrf.mxu0
        %347 = vmatprep.mubr.f32.mxu0 0.0
        %348 = vmatmul.mubr.f32.gmra.mxu0 %v222
        %v349 = vpop.f32.mrf.mxu0
        %v350 = vadd.f32 %v197, %v349
        %v351 = vpop.f32.mrf.mxu0
        %352 = vmatprep.mubr.f32.mxu0 0.0
        %353 = vmatmul.mubr.f32.gmra.mxu0 %v225
        %v354 = vpop.f32.mrf.mxu0
        %v355 = vadd.f32 %v197, %v354
        %v356 = vpop.f32.mrf.mxu0
        %357 = vmatprep.mubr.f32.mxu0 0.0
        %358 = vmatmul.mubr.f32.gmra.mxu0 %v228
        %v359 = vpop.f32.mrf.mxu0
        %v360 = vadd.f32 %v197, %v359
        %v361 = vpop.f32.mrf.mxu0
        %362 = vmatprep.mubr.f32.mxu0 0.0
        %363 = vmatmul.mubr.f32.gmra.mxu0 %v231
        %v364 = vpop.f32.mrf.mxu0
        %v365 = vadd.f32 %v197, %v364
        %v366 = vpop.f32.mrf.mxu0
        %367 = vmatprep.mubr.f32.mxu0 0.0
        %368 = vmatmul.mubr.f32.gmra.mxu0 %v234
        %v369 = vpop.f32.mrf.mxu0
        %v370 = vadd.f32 %v197, %v369
        %v371 = vpop.f32.mrf.mxu0
        %372 = vmatprep.mubr.f32.mxu0 0.0
        %373 = vmatmul.mubr.f32.gmra.mxu0 %v237
        %v374 = vpop.f32.mrf.mxu0
        %v375 = vadd.f32 %v197, %v374
        %v376 = vpop.f32.mrf.mxu0
        %377 = vmatprep.mubr.f32.mxu0 0.0
        %378 = vmatmul.mubr.f32.gmra.mxu0 %v240
        %v379 = vpop.f32.mrf.mxu0
        %v380 = vadd.f32 %v197, %v379
        %v381 = vpop.f32.mrf.mxu0
        %382 = vmatprep.mubr.f32.mxu0 0.0
        %383 = vmatmul.mubr.f32.gmra.mxu0 %v243
        %v384 = vpop.f32.mrf.mxu0
        %v385 = vadd.f32 %v197, %v384
        %v386 = vpop.f32.mrf.mxu0
        %387 = vmatprep.mubr.f32.mxu0 0.0
        %388 = vmatmul.mubr.f32.gmra.mxu0 %v246
        %v389 = vpop.f32.mrf.mxu0
        %v390 = vadd.f32 %v197, %v389
        %v391 = vpop.f32.mrf.mxu0
        %392 = vdwg.mxu0
        %v393 = vmul.f32 %v315, 30.0
        %v394 = vmul.f32 %v320, 30.0
        %v395 = vmul.f32 %v325, 30.0
        %v396 = vmul.f32 %v330, 30.0
        %v397 = vmul.f32 %v335, 30.0
        %v398 = vmul.f32 %v340, 30.0
        %v399 = vmul.f32 %v345, 30.0
        %v400 = vmul.f32 %v350, 30.0
        %v401 = vmul.f32 %v355, 30.0
        %v402 = vmul.f32 %v360, 30.0
        %v403 = vmul.f32 %v365, 30.0
        %v404 = vmul.f32 %v370, 30.0
        %v405 = vmul.f32 %v375, 30.0
        %v406 = vmul.f32 %v380, 30.0
        %v407 = vmul.f32 %v385, 30.0
        %v408 = vmul.f32 %v390, 30.0
        %v409 = vand.u32 2147483647, %v393
        %vm410 = vcmp.le.f32.partialorder %v409, 0.7853982
        %vm411 = vcmp.lt.s32.totalorder %v393, 0
        %v412 = vand.u32 %v393, 2139095040
        %v413 = vshrl.u32 %v412, 23
        %v414 = vsub.s32 %v413, 127
        %v415 = vand.u32 2147483647, %v393
        %v416 = vand.u32 %v415, 8388607
        %v417 = vor.u32 %v416, 8388608
        %v418 = vsub.s32 0, %v417
        %v419 = vadd.s32 %v414, 1
        %vm420 = vcmp.gt.s32.totalorder %v419, 0
        %v421 = vsel %vm420, %v419, 0
        %v422 = vshrl.u32 %v421, 5
        %v423 = vand.u32 %v421, 31
        %v424 = vsub.s32 32, %v423
        %v425 = vshrl.u32 683565275, %v424
        %v426 = vshll.u32 683565275, %v423
        %v427 = vshrl.u32 2475754826, %v424
        %v428 = vor.u32 %v426, %v427
        %v429 = vshll.u32 2475754826, %v423
        %v430 = vshrl.u32 2131351028, %v424
        %v431 = vor.u32 %v429, %v430
        %v432 = vshll.u32 2131351028, %v423
        %v433 = vshrl.u32 2102212464, %v424
        %v434 = vor.u32 %v432, %v433
        %v435 = vshll.u32 2102212464, %v423
        %v436 = vshrl.u32 920167782, %v424
        %v437 = vor.u32 %v435, %v436
        %v438 = vshll.u32 920167782, %v423
        %v439 = vshrl.u32 1326507024, %v424
        %v440 = vor.u32 %v438, %v439
        %vm441 = vcmp.lt.s32.totalorder %v422, 1
        %vm442 = vcmp.lt.s32.totalorder %v422, 2
        %vm443 = vcmp.lt.s32.totalorder %v422, 3
        %vm444 = vcmp.lt.s32.totalorder %v422, 4
        %v445 = vsel %vm441, %v425, %v428
        %v446 = vsel %vm444, %v434, 2102212464
        %v447 = vsel %vm443, %v431, %v446
        %v448 = vsel %vm442, %v445, %v447
        %v449 = vsel %vm441, %v428, %v431
        %v450 = vsel %vm444, %v437, 920167782
        %v451 = vsel %vm443, %v434, %v450
        %v452 = vsel %vm442, %v449, %v451
        %v453 = vsel %vm441, %v431, %v434
        %v454 = vsel %vm444, %v440, 1326507024
        %v455 = vsel %vm443, %v437, %v454
        %v456 = vsel %vm442, %v453, %v455
        %v457 = vshll.u32 %v417, 8
        %v458 = vmul.u32.u64.compose %v457, %v456
        %v459 = vextract.low.u32 %v458
        %v460 = vextract.high.u32 %v458
        %v461 = vmul.u32.u64.compose %v457, %v452
        %v462 = vextract.low.u32 %v461
        %v463 = vextract.high.u32 %v461
        %v464 = vmul.u32 %v457, %v448
        %v465 = vadd.s32 %v460, %v462
        %vm466 = vc.u32 %v460, %v462
        %v467 = vadd.s32 %v463, 1
        %v468 = vsel %vm466, %v467, %v463
        %v469 = vadd.s32 %v464, %v468
        %v470 = vadd.s32 %v469, 536870912
        %v471 = vshrl.u32 %v470, 30
        %v472 = vshll.u32 %v471, 30
        %v473 = vsub.s32 %v469, %v472
        %vm474 = vcmp.lt.s32.totalorder %v473, 0
        %v475 = vsub.s32 0, %v473
        %v476 = vsel %vm474, %v475, %v473
        %v477 = vclz %v476
        %v478 = vsub.s32 %v477, 2
        %vm479 = vcmp.gt.s32.totalorder 0, %v478
        %v480 = vsel %vm479, 0, %v478
        %v481 = vsub.s32 32, %v480
        %v482 = vshll.u32 %v473, %v480
        %v483 = vshrl.u32 %v465, %v481
        %v484 = vor.u32 %v482, %v483
        %v485 = vsub.s32 4294967266, %v480
        %v486 = vadd.s32 %v485, 127
        %v487 = vshll.u32 %v486, 23
        %v488 = vor.u32 4788187, %v487
        %v489 = vand.u32 2147483647, %v488
        %v491 = vcvt.s32.f32 %v484
        %v492 = vmul.f32 %v491, %v489
        %v493 = vxor.u32 %v492, 2147483648
        %v494 = vsel %vm411, %v493, %v492
        %v495 = vsub.s32 4, %v471
        %v496 = vsel %vm411, %v495, %v471
        %v497 = vsel %vm410, %v393, %v494
        %v498 = vsel %vm410, 0, %v496
        %v499 = vcosq.f32.pop %v497
        %v500 = vsinq.f32.pop %v497
        %vm501 = vweird.f32 %v393
        %v502 = vadd.s32 %v498, 3
        %v503 = vand.u32 %v502, 3
        %vm504 = vcmp.lt.s32.totalorder %v503, 2
        %vm505 = vcmp.eq.s32.totalorder %v503, 0
        %v506 = vxor.u32 %v500, 2147483648
        %v507 = vsel %vm505, %v499, %v506
        %vm508 = vcmp.eq.s32.totalorder %v503, 2
        %v509 = vxor.u32 %v499, 2147483648
        %v510 = vsel %vm508, %v509, %v500
        %v511 = vsel %vm504, %v507, %v510
        %v512 = vsel %vm501, nan, %v511
        %v513 = vand.u32 2147483647, %v394
        %vm514 = vcmp.le.f32.partialorder %v513, 0.7853982
        %vm515 = vcmp.lt.s32.totalorder %v394, 0
        %v516 = vand.u32 %v394, 2139095040
        %v517 = vshrl.u32 %v516, 23
        %v518 = vsub.s32 %v517, 127
        %v519 = vand.u32 2147483647, %v394
        %v520 = vand.u32 %v519, 8388607
        %v521 = vor.u32 %v520, 8388608
        %v522 = vsub.s32 0, %v521
        %v523 = vadd.s32 %v518, 1
        %vm524 = vcmp.gt.s32.totalorder %v523, 0
        %v525 = vsel %vm524, %v523, 0
        %v526 = vshrl.u32 %v525, 5
        %v527 = vand.u32 %v525, 31
        %v528 = vsub.s32 32, %v527
        %v529 = vshrl.u32 683565275, %v528
        %v530 = vshll.u32 683565275, %v527
        %v531 = vshrl.u32 2475754826, %v528
        %v532 = vor.u32 %v530, %v531
        %v533 = vshll.u32 2475754826, %v527
        %v534 = vshrl.u32 2131351028, %v528
        %v535 = vor.u32 %v533, %v534
        %v536 = vshll.u32 2131351028, %v527
        %v537 = vshrl.u32 2102212464, %v528
        %v538 = vor.u32 %v536, %v537
        %v539 = vshll.u32 2102212464, %v527
        %v540 = vshrl.u32 920167782, %v528
        %v541 = vor.u32 %v539, %v540
        %v542 = vshll.u32 920167782, %v527
        %v543 = vshrl.u32 1326507024, %v528
        %v544 = vor.u32 %v542, %v543
        %vm545 = vcmp.lt.s32.totalorder %v526, 1
        %vm546 = vcmp.lt.s32.totalorder %v526, 2
        %vm547 = vcmp.lt.s32.totalorder %v526, 3
        %vm548 = vcmp.lt.s32.totalorder %v526, 4
        %v549 = vsel %vm545, %v529, %v532
        %v550 = vsel %vm548, %v538, 2102212464
        %v551 = vsel %vm547, %v535, %v550
        %v552 = vsel %vm546, %v549, %v551
        %v553 = vsel %vm545, %v532, %v535
        %v554 = vsel %vm548, %v541, 920167782
        %v555 = vsel %vm547, %v538, %v554
        %v556 = vsel %vm546, %v553, %v555
        %v557 = vsel %vm545, %v535, %v538
        %v558 = vsel %vm548, %v544, 1326507024
        %v559 = vsel %vm547, %v541, %v558
        %v560 = vsel %vm546, %v557, %v559
        %v561 = vshll.u32 %v521, 8
        %v562 = vmul.u32.u64.compose %v561, %v560
        %v563 = vextract.low.u32 %v562
        %v564 = vextract.high.u32 %v562
        %v565 = vmul.u32.u64.compose %v561, %v556
        %v566 = vextract.low.u32 %v565
        %v567 = vextract.high.u32 %v565
        %v568 = vmul.u32 %v561, %v552
        %v569 = vadd.s32 %v564, %v566
        %vm570 = vc.u32 %v564, %v566
        %v571 = vadd.s32 %v567, 1
        %v572 = vsel %vm570, %v571, %v567
        %v573 = vadd.s32 %v568, %v572
        %v574 = vadd.s32 %v573, 536870912
        %v575 = vshrl.u32 %v574, 30
        %v576 = vshll.u32 %v575, 30
        %v577 = vsub.s32 %v573, %v576
        %vm578 = vcmp.lt.s32.totalorder %v577, 0
        %v579 = vsub.s32 0, %v577
        %v580 = vsel %vm578, %v579, %v577
        %v581 = vclz %v580
        %v582 = vsub.s32 %v581, 2
        %vm583 = vcmp.gt.s32.totalorder 0, %v582
        %v584 = vsel %vm583, 0, %v582
        %v585 = vsub.s32 32, %v584
        %v586 = vshll.u32 %v577, %v584
        %v587 = vshrl.u32 %v569, %v585
        %v588 = vor.u32 %v586, %v587
        %v589 = vsub.s32 4294967266, %v584
        %v590 = vadd.s32 %v589, 127
        %v591 = vshll.u32 %v590, 23
        %v592 = vor.u32 4788187, %v591
        %v593 = vand.u32 2147483647, %v592
        %v595 = vcvt.s32.f32 %v588
        %v596 = vmul.f32 %v595, %v593
        %v597 = vxor.u32 %v596, 2147483648
        %v598 = vsel %vm515, %v597, %v596
        %v599 = vsub.s32 4, %v575
        %v600 = vsel %vm515, %v599, %v575
        %v601 = vsel %vm514, %v394, %v598
        %v602 = vsel %vm514, 0, %v600
        %v603 = vcosq.f32.pop %v601
        %v604 = vsinq.f32.pop %v601
        %vm605 = vweird.f32 %v394
        %v606 = vadd.s32 %v602, 3
        %v607 = vand.u32 %v606, 3
        %vm608 = vcmp.lt.s32.totalorder %v607, 2
        %vm609 = vcmp.eq.s32.totalorder %v607, 0
        %v610 = vxor.u32 %v604, 2147483648
        %v611 = vsel %vm609, %v603, %v610
        %vm612 = vcmp.eq.s32.totalorder %v607, 2
        %v613 = vxor.u32 %v603, 2147483648
        %v614 = vsel %vm612, %v613, %v604
        %v615 = vsel %vm608, %v611, %v614
        %v616 = vsel %vm605, nan, %v615
        %v617 = vand.u32 2147483647, %v395
        %vm618 = vcmp.le.f32.partialorder %v617, 0.7853982
        %vm619 = vcmp.lt.s32.totalorder %v395, 0
        %v620 = vand.u32 %v395, 2139095040
        %v621 = vshrl.u32 %v620, 23
        %v622 = vsub.s32 %v621, 127
        %v623 = vand.u32 2147483647, %v395
        %v624 = vand.u32 %v623, 8388607
        %v625 = vor.u32 %v624, 8388608
        %v626 = vsub.s32 0, %v625
        %v627 = vadd.s32 %v622, 1
        %vm628 = vcmp.gt.s32.totalorder %v627, 0
        %v629 = vsel %vm628, %v627, 0
        %v630 = vshrl.u32 %v629, 5
        %v631 = vand.u32 %v629, 31
        %v632 = vsub.s32 32, %v631
        %v633 = vshrl.u32 683565275, %v632
        %v634 = vshll.u32 683565275, %v631
        %v635 = vshrl.u32 2475754826, %v632
        %v636 = vor.u32 %v634, %v635
        %v637 = vshll.u32 2475754826, %v631
        %v638 = vshrl.u32 2131351028, %v632
        %v639 = vor.u32 %v637, %v638
        %v640 = vshll.u32 2131351028, %v631
        %v641 = vshrl.u32 2102212464, %v632
        %v642 = vor.u32 %v640, %v641
        %v643 = vshll.u32 2102212464, %v631
        %v644 = vshrl.u32 920167782, %v632
        %v645 = vor.u32 %v643, %v644
        %v646 = vshll.u32 920167782, %v631
        %v647 = vshrl.u32 1326507024, %v632
        %v648 = vor.u32 %v646, %v647
        %vm649 = vcmp.lt.s32.totalorder %v630, 1
        %vm650 = vcmp.lt.s32.totalorder %v630, 2
        %vm651 = vcmp.lt.s32.totalorder %v630, 3
        %vm652 = vcmp.lt.s32.totalorder %v630, 4
        %v653 = vsel %vm649, %v633, %v636
        %v654 = vsel %vm652, %v642, 2102212464
        %v655 = vsel %vm651, %v639, %v654
        %v656 = vsel %vm650, %v653, %v655
        %v657 = vsel %vm649, %v636, %v639
        %v658 = vsel %vm652, %v645, 920167782
        %v659 = vsel %vm651, %v642, %v658
        %v660 = vsel %vm650, %v657, %v659
        %v661 = vsel %vm649, %v639, %v642
        %v662 = vsel %vm652, %v648, 1326507024
        %v663 = vsel %vm651, %v645, %v662
        %v664 = vsel %vm650, %v661, %v663
        %v665 = vshll.u32 %v625, 8
        %v666 = vmul.u32.u64.compose %v665, %v664
        %v667 = vextract.low.u32 %v666
        %v668 = vextract.high.u32 %v666
        %v669 = vmul.u32.u64.compose %v665, %v660
        %v670 = vextract.low.u32 %v669
        %v671 = vextract.high.u32 %v669
        %v672 = vmul.u32 %v665, %v656
        %v673 = vadd.s32 %v668, %v670
        %vm674 = vc.u32 %v668, %v670
        %v675 = vadd.s32 %v671, 1
        %v676 = vsel %vm674, %v675, %v671
        %v677 = vadd.s32 %v672, %v676
        %v678 = vadd.s32 %v677, 536870912
        %v679 = vshrl.u32 %v678, 30
        %v680 = vshll.u32 %v679, 30
        %v681 = vsub.s32 %v677, %v680
        %vm682 = vcmp.lt.s32.totalorder %v681, 0
        %v683 = vsub.s32 0, %v681
        %v684 = vsel %vm682, %v683, %v681
        %v685 = vclz %v684
        %v686 = vsub.s32 %v685, 2
        %vm687 = vcmp.gt.s32.totalorder 0, %v686
        %v688 = vsel %vm687, 0, %v686
        %v689 = vsub.s32 32, %v688
        %v690 = vshll.u32 %v681, %v688
        %v691 = vshrl.u32 %v673, %v689
        %v692 = vor.u32 %v690, %v691
        %v693 = vsub.s32 4294967266, %v688
        %v694 = vadd.s32 %v693, 127
        %v695 = vshll.u32 %v694, 23
        %v696 = vor.u32 4788187, %v695
        %v697 = vand.u32 2147483647, %v696
        %v699 = vcvt.s32.f32 %v692
        %v700 = vmul.f32 %v699, %v697
        %v701 = vxor.u32 %v700, 2147483648
        %v702 = vsel %vm619, %v701, %v700
        %v703 = vsub.s32 4, %v679
        %v704 = vsel %vm619, %v703, %v679
        %v705 = vsel %vm618, %v395, %v702
        %v706 = vsel %vm618, 0, %v704
        %v707 = vcosq.f32.pop %v705
        %v708 = vsinq.f32.pop %v705
        %vm709 = vweird.f32 %v395
        %v710 = vadd.s32 %v706, 3
        %v711 = vand.u32 %v710, 3
        %vm712 = vcmp.lt.s32.totalorder %v711, 2
        %vm713 = vcmp.eq.s32.totalorder %v711, 0
        %v714 = vxor.u32 %v708, 2147483648
        %v715 = vsel %vm713, %v707, %v714
        %vm716 = vcmp.eq.s32.totalorder %v711, 2
        %v717 = vxor.u32 %v707, 2147483648
        %v718 = vsel %vm716, %v717, %v708
        %v719 = vsel %vm712, %v715, %v718
        %v720 = vsel %vm709, nan, %v719
        %v721 = vand.u32 2147483647, %v396
        %vm722 = vcmp.le.f32.partialorder %v721, 0.7853982
        %vm723 = vcmp.lt.s32.totalorder %v396, 0
        %v724 = vand.u32 %v396, 2139095040
        %v725 = vshrl.u32 %v724, 23
        %v726 = vsub.s32 %v725, 127
        %v727 = vand.u32 2147483647, %v396
        %v728 = vand.u32 %v727, 8388607
        %v729 = vor.u32 %v728, 8388608
        %v730 = vsub.s32 0, %v729
        %v731 = vadd.s32 %v726, 1
        %vm732 = vcmp.gt.s32.totalorder %v731, 0
        %v733 = vsel %vm732, %v731, 0
        %v734 = vshrl.u32 %v733, 5
        %v735 = vand.u32 %v733, 31
        %v736 = vsub.s32 32, %v735
        %v737 = vshrl.u32 683565275, %v736
        %v738 = vshll.u32 683565275, %v735
        %v739 = vshrl.u32 2475754826, %v736
        %v740 = vor.u32 %v738, %v739
        %v741 = vshll.u32 2475754826, %v735
        %v742 = vshrl.u32 2131351028, %v736
        %v743 = vor.u32 %v741, %v742
        %v744 = vshll.u32 2131351028, %v735
        %v745 = vshrl.u32 2102212464, %v736
        %v746 = vor.u32 %v744, %v745
        %v747 = vshll.u32 2102212464, %v735
        %v748 = vshrl.u32 920167782, %v736
        %v749 = vor.u32 %v747, %v748
        %v750 = vshll.u32 920167782, %v735
        %v751 = vshrl.u32 1326507024, %v736
        %v752 = vor.u32 %v750, %v751
        %vm753 = vcmp.lt.s32.totalorder %v734, 1
        %vm754 = vcmp.lt.s32.totalorder %v734, 2
        %vm755 = vcmp.lt.s32.totalorder %v734, 3
        %vm756 = vcmp.lt.s32.totalorder %v734, 4
        %v757 = vsel %vm753, %v737, %v740
        %v758 = vsel %vm756, %v746, 2102212464
        %v759 = vsel %vm755, %v743, %v758
        %v760 = vsel %vm754, %v757, %v759
        %v761 = vsel %vm753, %v740, %v743
        %v762 = vsel %vm756, %v749, 920167782
        %v763 = vsel %vm755, %v746, %v762
        %v764 = vsel %vm754, %v761, %v763
        %v765 = vsel %vm753, %v743, %v746
        %v766 = vsel %vm756, %v752, 1326507024
        %v767 = vsel %vm755, %v749, %v766
        %v768 = vsel %vm754, %v765, %v767
        %v769 = vshll.u32 %v729, 8
        %v770 = vmul.u32.u64.compose %v769, %v768
        %v771 = vextract.low.u32 %v770
        %v772 = vextract.high.u32 %v770
        %v773 = vmul.u32.u64.compose %v769, %v764
        %v774 = vextract.low.u32 %v773
        %v775 = vextract.high.u32 %v773
        %v776 = vmul.u32 %v769, %v760
        %v777 = vadd.s32 %v772, %v774
        %vm778 = vc.u32 %v772, %v774
        %v779 = vadd.s32 %v775, 1
        %v780 = vsel %vm778, %v779, %v775
        %v781 = vadd.s32 %v776, %v780
        %v782 = vadd.s32 %v781, 536870912
        %v783 = vshrl.u32 %v782, 30
        %v784 = vshll.u32 %v783, 30
        %v785 = vsub.s32 %v781, %v784
        %vm786 = vcmp.lt.s32.totalorder %v785, 0
        %v787 = vsub.s32 0, %v785
        %v788 = vsel %vm786, %v787, %v785
        %v789 = vclz %v788
        %v790 = vsub.s32 %v789, 2
        %vm791 = vcmp.gt.s32.totalorder 0, %v790
        %v792 = vsel %vm791, 0, %v790
        %v793 = vsub.s32 32, %v792
        %v794 = vshll.u32 %v785, %v792
        %v795 = vshrl.u32 %v777, %v793
        %v796 = vor.u32 %v794, %v795
        %v797 = vsub.s32 4294967266, %v792
        %v798 = vadd.s32 %v797, 127
        %v799 = vshll.u32 %v798, 23
        %v800 = vor.u32 4788187, %v799
        %v801 = vand.u32 2147483647, %v800
        %v803 = vcvt.s32.f32 %v796
        %v804 = vmul.f32 %v803, %v801
        %v805 = vxor.u32 %v804, 2147483648
        %v806 = vsel %vm723, %v805, %v804
        %v807 = vsub.s32 4, %v783
        %v808 = vsel %vm723, %v807, %v783
        %v809 = vsel %vm722, %v396, %v806
        %v810 = vsel %vm722, 0, %v808
        %v811 = vcosq.f32.pop %v809
        %v812 = vsinq.f32.pop %v809
        %vm813 = vweird.f32 %v396
        %v814 = vadd.s32 %v810, 3
        %v815 = vand.u32 %v814, 3
        %vm816 = vcmp.lt.s32.totalorder %v815, 2
        %vm817 = vcmp.eq.s32.totalorder %v815, 0
        %v818 = vxor.u32 %v812, 2147483648
        %v819 = vsel %vm817, %v811, %v818
        %vm820 = vcmp.eq.s32.totalorder %v815, 2
        %v821 = vxor.u32 %v811, 2147483648
        %v822 = vsel %vm820, %v821, %v812
        %v823 = vsel %vm816, %v819, %v822
        %v824 = vsel %vm813, nan, %v823
        %v825 = vand.u32 2147483647, %v397
        %vm826 = vcmp.le.f32.partialorder %v825, 0.7853982
        %vm827 = vcmp.lt.s32.totalorder %v397, 0
        %v828 = vand.u32 %v397, 2139095040
        %v829 = vshrl.u32 %v828, 23
        %v830 = vsub.s32 %v829, 127
        %v831 = vand.u32 2147483647, %v397
        %v832 = vand.u32 %v831, 8388607
        %v833 = vor.u32 %v832, 8388608
        %v834 = vsub.s32 0, %v833
        %v835 = vadd.s32 %v830, 1
        %vm836 = vcmp.gt.s32.totalorder %v835, 0
        %v837 = vsel %vm836, %v835, 0
        %v838 = vshrl.u32 %v837, 5
        %v839 = vand.u32 %v837, 31
        %v840 = vsub.s32 32, %v839
        %v841 = vshrl.u32 683565275, %v840
        %v842 = vshll.u32 683565275, %v839
        %v843 = vshrl.u32 2475754826, %v840
        %v844 = vor.u32 %v842, %v843
        %v845 = vshll.u32 2475754826, %v839
        %v846 = vshrl.u32 2131351028, %v840
        %v847 = vor.u32 %v845, %v846
        %v848 = vshll.u32 2131351028, %v839
        %v849 = vshrl.u32 2102212464, %v840
        %v850 = vor.u32 %v848, %v849
        %v851 = vshll.u32 2102212464, %v839
        %v852 = vshrl.u32 920167782, %v840
        %v853 = vor.u32 %v851, %v852
        %v854 = vshll.u32 920167782, %v839
        %v855 = vshrl.u32 1326507024, %v840
        %v856 = vor.u32 %v854, %v855
        %vm857 = vcmp.lt.s32.totalorder %v838, 1
        %vm858 = vcmp.lt.s32.totalorder %v838, 2
        %vm859 = vcmp.lt.s32.totalorder %v838, 3
        %vm860 = vcmp.lt.s32.totalorder %v838, 4
        %v861 = vsel %vm857, %v841, %v844
        %v862 = vsel %vm860, %v850, 2102212464
        %v863 = vsel %vm859, %v847, %v862
        %v864 = vsel %vm858, %v861, %v863
        %v865 = vsel %vm857, %v844, %v847
        %v866 = vsel %vm860, %v853, 920167782
        %v867 = vsel %vm859, %v850, %v866
        %v868 = vsel %vm858, %v865, %v867
        %v869 = vsel %vm857, %v847, %v850
        %v870 = vsel %vm860, %v856, 1326507024
        %v871 = vsel %vm859, %v853, %v870
        %v872 = vsel %vm858, %v869, %v871
        %v873 = vshll.u32 %v833, 8
        %v874 = vmul.u32.u64.compose %v873, %v872
        %v875 = vextract.low.u32 %v874
        %v876 = vextract.high.u32 %v874
        %v877 = vmul.u32.u64.compose %v873, %v868
        %v878 = vextract.low.u32 %v877
        %v879 = vextract.high.u32 %v877
        %v880 = vmul.u32 %v873, %v864
        %v881 = vadd.s32 %v876, %v878
        %vm882 = vc.u32 %v876, %v878
        %v883 = vadd.s32 %v879, 1
        %v884 = vsel %vm882, %v883, %v879
        %v885 = vadd.s32 %v880, %v884
        %v886 = vadd.s32 %v885, 536870912
        %v887 = vshrl.u32 %v886, 30
        %v888 = vshll.u32 %v887, 30
        %v889 = vsub.s32 %v885, %v888
        %vm890 = vcmp.lt.s32.totalorder %v889, 0
        %v891 = vsub.s32 0, %v889
        %v892 = vsel %vm890, %v891, %v889
        %v893 = vclz %v892
        %v894 = vsub.s32 %v893, 2
        %vm895 = vcmp.gt.s32.totalorder 0, %v894
        %v896 = vsel %vm895, 0, %v894
        %v897 = vsub.s32 32, %v896
        %v898 = vshll.u32 %v889, %v896
        %v899 = vshrl.u32 %v881, %v897
        %v900 = vor.u32 %v898, %v899
        %v901 = vsub.s32 4294967266, %v896
        %v902 = vadd.s32 %v901, 127
        %v903 = vshll.u32 %v902, 23
        %v904 = vor.u32 4788187, %v903
        %v905 = vand.u32 2147483647, %v904
        %v907 = vcvt.s32.f32 %v900
        %v908 = vmul.f32 %v907, %v905
        %v909 = vxor.u32 %v908, 2147483648
        %v910 = vsel %vm827, %v909, %v908
        %v911 = vsub.s32 4, %v887
        %v912 = vsel %vm827, %v911, %v887
        %v913 = vsel %vm826, %v397, %v910
        %v914 = vsel %vm826, 0, %v912
        %v915 = vcosq.f32.pop %v913
        %v916 = vsinq.f32.pop %v913
        %vm917 = vweird.f32 %v397
        %v918 = vadd.s32 %v914, 3
        %v919 = vand.u32 %v918, 3
        %vm920 = vcmp.lt.s32.totalorder %v919, 2
        %vm921 = vcmp.eq.s32.totalorder %v919, 0
        %v922 = vxor.u32 %v916, 2147483648
        %v923 = vsel %vm921, %v915, %v922
        %vm924 = vcmp.eq.s32.totalorder %v919, 2
        %v925 = vxor.u32 %v915, 2147483648
        %v926 = vsel %vm924, %v925, %v916
        %v927 = vsel %vm920, %v923, %v926
        %v928 = vsel %vm917, nan, %v927
        %v929 = vand.u32 2147483647, %v398
        %vm930 = vcmp.le.f32.partialorder %v929, 0.7853982
        %vm931 = vcmp.lt.s32.totalorder %v398, 0
        %v932 = vand.u32 %v398, 2139095040
        %v933 = vshrl.u32 %v932, 23
        %v934 = vsub.s32 %v933, 127
        %v935 = vand.u32 2147483647, %v398
        %v936 = vand.u32 %v935, 8388607
        %v937 = vor.u32 %v936, 8388608
        %v938 = vsub.s32 0, %v937
        %v939 = vadd.s32 %v934, 1
        %vm940 = vcmp.gt.s32.totalorder %v939, 0
        %v941 = vsel %vm940, %v939, 0
        %v942 = vshrl.u32 %v941, 5
        %v943 = vand.u32 %v941, 31
        %v944 = vsub.s32 32, %v943
        %v945 = vshrl.u32 683565275, %v944
        %v946 = vshll.u32 683565275, %v943
        %v947 = vshrl.u32 2475754826, %v944
        %v948 = vor.u32 %v946, %v947
        %v949 = vshll.u32 2475754826, %v943
        %v950 = vshrl.u32 2131351028, %v944
        %v951 = vor.u32 %v949, %v950
        %v952 = vshll.u32 2131351028, %v943
        %v953 = vshrl.u32 2102212464, %v944
        %v954 = vor.u32 %v952, %v953
        %v955 = vshll.u32 2102212464, %v943
        %v956 = vshrl.u32 920167782, %v944
        %v957 = vor.u32 %v955, %v956
        %v958 = vshll.u32 920167782, %v943
        %v959 = vshrl.u32 1326507024, %v944
        %v960 = vor.u32 %v958, %v959
        %vm961 = vcmp.lt.s32.totalorder %v942, 1
        %vm962 = vcmp.lt.s32.totalorder %v942, 2
        %vm963 = vcmp.lt.s32.totalorder %v942, 3
        %vm964 = vcmp.lt.s32.totalorder %v942, 4
        %v965 = vsel %vm961, %v945, %v948
        %v966 = vsel %vm964, %v954, 2102212464
        %v967 = vsel %vm963, %v951, %v966
        %v968 = vsel %vm962, %v965, %v967
        %v969 = vsel %vm961, %v948, %v951
        %v970 = vsel %vm964, %v957, 920167782
        %v971 = vsel %vm963, %v954, %v970
        %v972 = vsel %vm962, %v969, %v971
        %v973 = vsel %vm961, %v951, %v954
        %v974 = vsel %vm964, %v960, 1326507024
        %v975 = vsel %vm963, %v957, %v974
        %v976 = vsel %vm962, %v973, %v975
        %v977 = vshll.u32 %v937, 8
        %v978 = vmul.u32.u64.compose %v977, %v976
        %v979 = vextract.low.u32 %v978
        %v980 = vextract.high.u32 %v978
        %v981 = vmul.u32.u64.compose %v977, %v972
        %v982 = vextract.low.u32 %v981
        %v983 = vextract.high.u32 %v981
        %v984 = vmul.u32 %v977, %v968
        %v985 = vadd.s32 %v980, %v982
        %vm986 = vc.u32 %v980, %v982
        %v987 = vadd.s32 %v983, 1
        %v988 = vsel %vm986, %v987, %v983
        %v989 = vadd.s32 %v984, %v988
        %v990 = vadd.s32 %v989, 536870912
        %v991 = vshrl.u32 %v990, 30
        %v992 = vshll.u32 %v991, 30
        %v993 = vsub.s32 %v989, %v992
        %vm994 = vcmp.lt.s32.totalorder %v993, 0
        %v995 = vsub.s32 0, %v993
        %v996 = vsel %vm994, %v995, %v993
        %v997 = vclz %v996
        %v998 = vsub.s32 %v997, 2
        %vm999 = vcmp.gt.s32.totalorder 0, %v998
        %v1000 = vsel %vm999, 0, %v998
        %v1001 = vsub.s32 32, %v1000
        %v1002 = vshll.u32 %v993, %v1000
        %v1003 = vshrl.u32 %v985, %v1001
        %v1004 = vor.u32 %v1002, %v1003
        %v1005 = vsub.s32 4294967266, %v1000
        %v1006 = vadd.s32 %v1005, 127
        %v1007 = vshll.u32 %v1006, 23
        %v1008 = vor.u32 4788187, %v1007
        %v1009 = vand.u32 2147483647, %v1008
        %v1011 = vcvt.s32.f32 %v1004
        %v1012 = vmul.f32 %v1011, %v1009
        %v1013 = vxor.u32 %v1012, 2147483648
        %v1014 = vsel %vm931, %v1013, %v1012
        %v1015 = vsub.s32 4, %v991
        %v1016 = vsel %vm931, %v1015, %v991
        %v1017 = vsel %vm930, %v398, %v1014
        %v1018 = vsel %vm930, 0, %v1016
        %v1019 = vcosq.f32.pop %v1017
        %v1020 = vsinq.f32.pop %v1017
        %vm1021 = vweird.f32 %v398
        %v1022 = vadd.s32 %v1018, 3
        %v1023 = vand.u32 %v1022, 3
        %vm1024 = vcmp.lt.s32.totalorder %v1023, 2
        %vm1025 = vcmp.eq.s32.totalorder %v1023, 0
        %v1026 = vxor.u32 %v1020, 2147483648
        %v1027 = vsel %vm1025, %v1019, %v1026
        %vm1028 = vcmp.eq.s32.totalorder %v1023, 2
        %v1029 = vxor.u32 %v1019, 2147483648
        %v1030 = vsel %vm1028, %v1029, %v1020
        %v1031 = vsel %vm1024, %v1027, %v1030
        %v1032 = vsel %vm1021, nan, %v1031
        %v1033 = vand.u32 2147483647, %v399
        %vm1034 = vcmp.le.f32.partialorder %v1033, 0.7853982
        %vm1035 = vcmp.lt.s32.totalorder %v399, 0
        %v1036 = vand.u32 %v399, 2139095040
        %v1037 = vshrl.u32 %v1036, 23
        %v1038 = vsub.s32 %v1037, 127
        %v1039 = vand.u32 2147483647, %v399
        %v1040 = vand.u32 %v1039, 8388607
        %v1041 = vor.u32 %v1040, 8388608
        %v1042 = vsub.s32 0, %v1041
        %v1043 = vadd.s32 %v1038, 1
        %vm1044 = vcmp.gt.s32.totalorder %v1043, 0
        %v1045 = vsel %vm1044, %v1043, 0
        %v1046 = vshrl.u32 %v1045, 5
        %v1047 = vand.u32 %v1045, 31
        %v1048 = vsub.s32 32, %v1047
        %v1049 = vshrl.u32 683565275, %v1048
        %v1050 = vshll.u32 683565275, %v1047
        %v1051 = vshrl.u32 2475754826, %v1048
        %v1052 = vor.u32 %v1050, %v1051
        %v1053 = vshll.u32 2475754826, %v1047
        %v1054 = vshrl.u32 2131351028, %v1048
        %v1055 = vor.u32 %v1053, %v1054
        %v1056 = vshll.u32 2131351028, %v1047
        %v1057 = vshrl.u32 2102212464, %v1048
        %v1058 = vor.u32 %v1056, %v1057
        %v1059 = vshll.u32 2102212464, %v1047
        %v1060 = vshrl.u32 920167782, %v1048
        %v1061 = vor.u32 %v1059, %v1060
        %v1062 = vshll.u32 920167782, %v1047
        %v1063 = vshrl.u32 1326507024, %v1048
        %v1064 = vor.u32 %v1062, %v1063
        %vm1065 = vcmp.lt.s32.totalorder %v1046, 1
        %vm1066 = vcmp.lt.s32.totalorder %v1046, 2
        %vm1067 = vcmp.lt.s32.totalorder %v1046, 3
        %vm1068 = vcmp.lt.s32.totalorder %v1046, 4
        %v1069 = vsel %vm1065, %v1049, %v1052
        %v1070 = vsel %vm1068, %v1058, 2102212464
        %v1071 = vsel %vm1067, %v1055, %v1070
        %v1072 = vsel %vm1066, %v1069, %v1071
        %v1073 = vsel %vm1065, %v1052, %v1055
        %v1074 = vsel %vm1068, %v1061, 920167782
        %v1075 = vsel %vm1067, %v1058, %v1074
        %v1076 = vsel %vm1066, %v1073, %v1075
        %v1077 = vsel %vm1065, %v1055, %v1058
        %v1078 = vsel %vm1068, %v1064, 1326507024
        %v1079 = vsel %vm1067, %v1061, %v1078
        %v1080 = vsel %vm1066, %v1077, %v1079
        %v1081 = vshll.u32 %v1041, 8
        %v1082 = vmul.u32.u64.compose %v1081, %v1080
        %v1083 = vextract.low.u32 %v1082
        %v1084 = vextract.high.u32 %v1082
        %v1085 = vmul.u32.u64.compose %v1081, %v1076
        %v1086 = vextract.low.u32 %v1085
        %v1087 = vextract.high.u32 %v1085
        %v1088 = vmul.u32 %v1081, %v1072
        %v1089 = vadd.s32 %v1084, %v1086
        %vm1090 = vc.u32 %v1084, %v1086
        %v1091 = vadd.s32 %v1087, 1
        %v1092 = vsel %vm1090, %v1091, %v1087
        %v1093 = vadd.s32 %v1088, %v1092
        %v1094 = vadd.s32 %v1093, 536870912
        %v1095 = vshrl.u32 %v1094, 30
        %v1096 = vshll.u32 %v1095, 30
        %v1097 = vsub.s32 %v1093, %v1096
        %vm1098 = vcmp.lt.s32.totalorder %v1097, 0
        %v1099 = vsub.s32 0, %v1097
        %v1100 = vsel %vm1098, %v1099, %v1097
        %v1101 = vclz %v1100
        %v1102 = vsub.s32 %v1101, 2
        %vm1103 = vcmp.gt.s32.totalorder 0, %v1102
        %v1104 = vsel %vm1103, 0, %v1102
        %v1105 = vsub.s32 32, %v1104
        %v1106 = vshll.u32 %v1097, %v1104
        %v1107 = vshrl.u32 %v1089, %v1105
        %v1108 = vor.u32 %v1106, %v1107
        %v1109 = vsub.s32 4294967266, %v1104
        %v1110 = vadd.s32 %v1109, 127
        %v1111 = vshll.u32 %v1110, 23
        %v1112 = vor.u32 4788187, %v1111
        %v1113 = vand.u32 2147483647, %v1112
        %v1115 = vcvt.s32.f32 %v1108
        %v1116 = vmul.f32 %v1115, %v1113
        %v1117 = vxor.u32 %v1116, 2147483648
        %v1118 = vsel %vm1035, %v1117, %v1116
        %v1119 = vsub.s32 4, %v1095
        %v1120 = vsel %vm1035, %v1119, %v1095
        %v1121 = vsel %vm1034, %v399, %v1118
        %v1122 = vsel %vm1034, 0, %v1120
        %v1123 = vcosq.f32.pop %v1121
        %v1124 = vsinq.f32.pop %v1121
        %vm1125 = vweird.f32 %v399
        %v1126 = vadd.s32 %v1122, 3
        %v1127 = vand.u32 %v1126, 3
        %vm1128 = vcmp.lt.s32.totalorder %v1127, 2
        %vm1129 = vcmp.eq.s32.totalorder %v1127, 0
        %v1130 = vxor.u32 %v1124, 2147483648
        %v1131 = vsel %vm1129, %v1123, %v1130
        %vm1132 = vcmp.eq.s32.totalorder %v1127, 2
        %v1133 = vxor.u32 %v1123, 2147483648
        %v1134 = vsel %vm1132, %v1133, %v1124
        %v1135 = vsel %vm1128, %v1131, %v1134
        %v1136 = vsel %vm1125, nan, %v1135
        %v1137 = vand.u32 2147483647, %v400
        %vm1138 = vcmp.le.f32.partialorder %v1137, 0.7853982
        %vm1139 = vcmp.lt.s32.totalorder %v400, 0
        %v1140 = vand.u32 %v400, 2139095040
        %v1141 = vshrl.u32 %v1140, 23
        %v1142 = vsub.s32 %v1141, 127
        %v1143 = vand.u32 2147483647, %v400
        %v1144 = vand.u32 %v1143, 8388607
        %v1145 = vor.u32 %v1144, 8388608
        %v1146 = vsub.s32 0, %v1145
        %v1147 = vadd.s32 %v1142, 1
        %vm1148 = vcmp.gt.s32.totalorder %v1147, 0
        %v1149 = vsel %vm1148, %v1147, 0
        %v1150 = vshrl.u32 %v1149, 5
        %v1151 = vand.u32 %v1149, 31
        %v1152 = vsub.s32 32, %v1151
        %v1153 = vshrl.u32 683565275, %v1152
        %v1154 = vshll.u32 683565275, %v1151
        %v1155 = vshrl.u32 2475754826, %v1152
        %v1156 = vor.u32 %v1154, %v1155
        %v1157 = vshll.u32 2475754826, %v1151
        %v1158 = vshrl.u32 2131351028, %v1152
        %v1159 = vor.u32 %v1157, %v1158
        %v1160 = vshll.u32 2131351028, %v1151
        %v1161 = vshrl.u32 2102212464, %v1152
        %v1162 = vor.u32 %v1160, %v1161
        %v1163 = vshll.u32 2102212464, %v1151
        %v1164 = vshrl.u32 920167782, %v1152
        %v1165 = vor.u32 %v1163, %v1164
        %v1166 = vshll.u32 920167782, %v1151
        %v1167 = vshrl.u32 1326507024, %v1152
        %v1168 = vor.u32 %v1166, %v1167
        %vm1169 = vcmp.lt.s32.totalorder %v1150, 1
        %vm1170 = vcmp.lt.s32.totalorder %v1150, 2
        %vm1171 = vcmp.lt.s32.totalorder %v1150, 3
        %vm1172 = vcmp.lt.s32.totalorder %v1150, 4
        %v1173 = vsel %vm1169, %v1153, %v1156
        %v1174 = vsel %vm1172, %v1162, 2102212464
        %v1175 = vsel %vm1171, %v1159, %v1174
        %v1176 = vsel %vm1170, %v1173, %v1175
        %v1177 = vsel %vm1169, %v1156, %v1159
        %v1178 = vsel %vm1172, %v1165, 920167782
        %v1179 = vsel %vm1171, %v1162, %v1178
        %v1180 = vsel %vm1170, %v1177, %v1179
        %v1181 = vsel %vm1169, %v1159, %v1162
        %v1182 = vsel %vm1172, %v1168, 1326507024
        %v1183 = vsel %vm1171, %v1165, %v1182
        %v1184 = vsel %vm1170, %v1181, %v1183
        %v1185 = vshll.u32 %v1145, 8
        %v1186 = vmul.u32.u64.compose %v1185, %v1184
        %v1187 = vextract.low.u32 %v1186
        %v1188 = vextract.high.u32 %v1186
        %v1189 = vmul.u32.u64.compose %v1185, %v1180
        %v1190 = vextract.low.u32 %v1189
        %v1191 = vextract.high.u32 %v1189
        %v1192 = vmul.u32 %v1185, %v1176
        %v1193 = vadd.s32 %v1188, %v1190
        %vm1194 = vc.u32 %v1188, %v1190
        %v1195 = vadd.s32 %v1191, 1
        %v1196 = vsel %vm1194, %v1195, %v1191
        %v1197 = vadd.s32 %v1192, %v1196
        %v1198 = vadd.s32 %v1197, 536870912
        %v1199 = vshrl.u32 %v1198, 30
        %v1200 = vshll.u32 %v1199, 30
        %v1201 = vsub.s32 %v1197, %v1200
        %vm1202 = vcmp.lt.s32.totalorder %v1201, 0
        %v1203 = vsub.s32 0, %v1201
        %v1204 = vsel %vm1202, %v1203, %v1201
        %v1205 = vclz %v1204
        %v1206 = vsub.s32 %v1205, 2
        %vm1207 = vcmp.gt.s32.totalorder 0, %v1206
        %v1208 = vsel %vm1207, 0, %v1206
        %v1209 = vsub.s32 32, %v1208
        %v1210 = vshll.u32 %v1201, %v1208
        %v1211 = vshrl.u32 %v1193, %v1209
        %v1212 = vor.u32 %v1210, %v1211
        %v1213 = vsub.s32 4294967266, %v1208
        %v1214 = vadd.s32 %v1213, 127
        %v1215 = vshll.u32 %v1214, 23
        %v1216 = vor.u32 4788187, %v1215
        %v1217 = vand.u32 2147483647, %v1216
        %v1219 = vcvt.s32.f32 %v1212
        %v1220 = vmul.f32 %v1219, %v1217
        %v1221 = vxor.u32 %v1220, 2147483648
        %v1222 = vsel %vm1139, %v1221, %v1220
        %v1223 = vsub.s32 4, %v1199
        %v1224 = vsel %vm1139, %v1223, %v1199
        %v1225 = vsel %vm1138, %v400, %v1222
        %v1226 = vsel %vm1138, 0, %v1224
        %v1227 = vcosq.f32.pop %v1225
        %v1228 = vsinq.f32.pop %v1225
        %vm1229 = vweird.f32 %v400
        %v1230 = vadd.s32 %v1226, 3
        %v1231 = vand.u32 %v1230, 3
        %vm1232 = vcmp.lt.s32.totalorder %v1231, 2
        %vm1233 = vcmp.eq.s32.totalorder %v1231, 0
        %v1234 = vxor.u32 %v1228, 2147483648
        %v1235 = vsel %vm1233, %v1227, %v1234
        %vm1236 = vcmp.eq.s32.totalorder %v1231, 2
        %v1237 = vxor.u32 %v1227, 2147483648
        %v1238 = vsel %vm1236, %v1237, %v1228
        %v1239 = vsel %vm1232, %v1235, %v1238
        %v1240 = vsel %vm1229, nan, %v1239
        %v1241 = vand.u32 2147483647, %v401
        %vm1242 = vcmp.le.f32.partialorder %v1241, 0.7853982
        %vm1243 = vcmp.lt.s32.totalorder %v401, 0
        %v1244 = vand.u32 %v401, 2139095040
        %v1245 = vshrl.u32 %v1244, 23
        %v1246 = vsub.s32 %v1245, 127
        %v1247 = vand.u32 2147483647, %v401
        %v1248 = vand.u32 %v1247, 8388607
        %v1249 = vor.u32 %v1248, 8388608
        %v1250 = vsub.s32 0, %v1249
        %v1251 = vadd.s32 %v1246, 1
        %vm1252 = vcmp.gt.s32.totalorder %v1251, 0
        %v1253 = vsel %vm1252, %v1251, 0
        %v1254 = vshrl.u32 %v1253, 5
        %v1255 = vand.u32 %v1253, 31
        %v1256 = vsub.s32 32, %v1255
        %v1257 = vshrl.u32 683565275, %v1256
        %v1258 = vshll.u32 683565275, %v1255
        %v1259 = vshrl.u32 2475754826, %v1256
        %v1260 = vor.u32 %v1258, %v1259
        %v1261 = vshll.u32 2475754826, %v1255
        %v1262 = vshrl.u32 2131351028, %v1256
        %v1263 = vor.u32 %v1261, %v1262
        %v1264 = vshll.u32 2131351028, %v1255
        %v1265 = vshrl.u32 2102212464, %v1256
        %v1266 = vor.u32 %v1264, %v1265
        %v1267 = vshll.u32 2102212464, %v1255
        %v1268 = vshrl.u32 920167782, %v1256
        %v1269 = vor.u32 %v1267, %v1268
        %v1270 = vshll.u32 920167782, %v1255
        %v1271 = vshrl.u32 1326507024, %v1256
        %v1272 = vor.u32 %v1270, %v1271
        %vm1273 = vcmp.lt.s32.totalorder %v1254, 1
        %vm1274 = vcmp.lt.s32.totalorder %v1254, 2
        %vm1275 = vcmp.lt.s32.totalorder %v1254, 3
        %vm1276 = vcmp.lt.s32.totalorder %v1254, 4
        %v1277 = vsel %vm1273, %v1257, %v1260
        %v1278 = vsel %vm1276, %v1266, 2102212464
        %v1279 = vsel %vm1275, %v1263, %v1278
        %v1280 = vsel %vm1274, %v1277, %v1279
        %v1281 = vsel %vm1273, %v1260, %v1263
        %v1282 = vsel %vm1276, %v1269, 920167782
        %v1283 = vsel %vm1275, %v1266, %v1282
        %v1284 = vsel %vm1274, %v1281, %v1283
        %v1285 = vsel %vm1273, %v1263, %v1266
        %v1286 = vsel %vm1276, %v1272, 1326507024
        %v1287 = vsel %vm1275, %v1269, %v1286
        %v1288 = vsel %vm1274, %v1285, %v1287
        %v1289 = vshll.u32 %v1249, 8
        %v1290 = vmul.u32.u64.compose %v1289, %v1288
        %v1291 = vextract.low.u32 %v1290
        %v1292 = vextract.high.u32 %v1290
        %v1293 = vmul.u32.u64.compose %v1289, %v1284
        %v1294 = vextract.low.u32 %v1293
        %v1295 = vextract.high.u32 %v1293
        %v1296 = vmul.u32 %v1289, %v1280
        %v1297 = vadd.s32 %v1292, %v1294
        %vm1298 = vc.u32 %v1292, %v1294
        %v1299 = vadd.s32 %v1295, 1
        %v1300 = vsel %vm1298, %v1299, %v1295
        %v1301 = vadd.s32 %v1296, %v1300
        %v1302 = vadd.s32 %v1301, 536870912
        %v1303 = vshrl.u32 %v1302, 30
        %v1304 = vshll.u32 %v1303, 30
        %v1305 = vsub.s32 %v1301, %v1304
        %vm1306 = vcmp.lt.s32.totalorder %v1305, 0
        %v1307 = vsub.s32 0, %v1305
        %v1308 = vsel %vm1306, %v1307, %v1305
        %v1309 = vclz %v1308
        %v1310 = vsub.s32 %v1309, 2
        %vm1311 = vcmp.gt.s32.totalorder 0, %v1310
        %v1312 = vsel %vm1311, 0, %v1310
        %v1313 = vsub.s32 32, %v1312
        %v1314 = vshll.u32 %v1305, %v1312
        %v1315 = vshrl.u32 %v1297, %v1313
        %v1316 = vor.u32 %v1314, %v1315
        %v1317 = vsub.s32 4294967266, %v1312
        %v1318 = vadd.s32 %v1317, 127
        %v1319 = vshll.u32 %v1318, 23
        %v1320 = vor.u32 4788187, %v1319
        %v1321 = vand.u32 2147483647, %v1320
        %v1323 = vcvt.s32.f32 %v1316
        %v1324 = vmul.f32 %v1323, %v1321
        %v1325 = vxor.u32 %v1324, 2147483648
        %v1326 = vsel %vm1243, %v1325, %v1324
        %v1327 = vsub.s32 4, %v1303
        %v1328 = vsel %vm1243, %v1327, %v1303
        %v1329 = vsel %vm1242, %v401, %v1326
        %v1330 = vsel %vm1242, 0, %v1328
        %v1331 = vcosq.f32.pop %v1329
        %v1332 = vsinq.f32.pop %v1329
        %vm1333 = vweird.f32 %v401
        %v1334 = vadd.s32 %v1330, 3
        %v1335 = vand.u32 %v1334, 3
        %vm1336 = vcmp.lt.s32.totalorder %v1335, 2
        %vm1337 = vcmp.eq.s32.totalorder %v1335, 0
        %v1338 = vxor.u32 %v1332, 2147483648
        %v1339 = vsel %vm1337, %v1331, %v1338
        %vm1340 = vcmp.eq.s32.totalorder %v1335, 2
        %v1341 = vxor.u32 %v1331, 2147483648
        %v1342 = vsel %vm1340, %v1341, %v1332
        %v1343 = vsel %vm1336, %v1339, %v1342
        %v1344 = vsel %vm1333, nan, %v1343
        %v1345 = vand.u32 2147483647, %v402
        %vm1346 = vcmp.le.f32.partialorder %v1345, 0.7853982
        %vm1347 = vcmp.lt.s32.totalorder %v402, 0
        %v1348 = vand.u32 %v402, 2139095040
        %v1349 = vshrl.u32 %v1348, 23
        %v1350 = vsub.s32 %v1349, 127
        %v1351 = vand.u32 2147483647, %v402
        %v1352 = vand.u32 %v1351, 8388607
        %v1353 = vor.u32 %v1352, 8388608
        %v1354 = vsub.s32 0, %v1353
        %v1355 = vadd.s32 %v1350, 1
        %vm1356 = vcmp.gt.s32.totalorder %v1355, 0
        %v1357 = vsel %vm1356, %v1355, 0
        %v1358 = vshrl.u32 %v1357, 5
        %v1359 = vand.u32 %v1357, 31
        %v1360 = vsub.s32 32, %v1359
        %v1361 = vshrl.u32 683565275, %v1360
        %v1362 = vshll.u32 683565275, %v1359
        %v1363 = vshrl.u32 2475754826, %v1360
        %v1364 = vor.u32 %v1362, %v1363
        %v1365 = vshll.u32 2475754826, %v1359
        %v1366 = vshrl.u32 2131351028, %v1360
        %v1367 = vor.u32 %v1365, %v1366
        %v1368 = vshll.u32 2131351028, %v1359
        %v1369 = vshrl.u32 2102212464, %v1360
        %v1370 = vor.u32 %v1368, %v1369
        %v1371 = vshll.u32 2102212464, %v1359
        %v1372 = vshrl.u32 920167782, %v1360
        %v1373 = vor.u32 %v1371, %v1372
        %v1374 = vshll.u32 920167782, %v1359
        %v1375 = vshrl.u32 1326507024, %v1360
        %v1376 = vor.u32 %v1374, %v1375
        %vm1377 = vcmp.lt.s32.totalorder %v1358, 1
        %vm1378 = vcmp.lt.s32.totalorder %v1358, 2
        %vm1379 = vcmp.lt.s32.totalorder %v1358, 3
        %vm1380 = vcmp.lt.s32.totalorder %v1358, 4
        %v1381 = vsel %vm1377, %v1361, %v1364
        %v1382 = vsel %vm1380, %v1370, 2102212464
        %v1383 = vsel %vm1379, %v1367, %v1382
        %v1384 = vsel %vm1378, %v1381, %v1383
        %v1385 = vsel %vm1377, %v1364, %v1367
        %v1386 = vsel %vm1380, %v1373, 920167782
        %v1387 = vsel %vm1379, %v1370, %v1386
        %v1388 = vsel %vm1378, %v1385, %v1387
        %v1389 = vsel %vm1377, %v1367, %v1370
        %v1390 = vsel %vm1380, %v1376, 1326507024
        %v1391 = vsel %vm1379, %v1373, %v1390
        %v1392 = vsel %vm1378, %v1389, %v1391
        %v1393 = vshll.u32 %v1353, 8
        %v1394 = vmul.u32.u64.compose %v1393, %v1392
        %v1395 = vextract.low.u32 %v1394
        %v1396 = vextract.high.u32 %v1394
        %v1397 = vmul.u32.u64.compose %v1393, %v1388
        %v1398 = vextract.low.u32 %v1397
        %v1399 = vextract.high.u32 %v1397
        %v1400 = vmul.u32 %v1393, %v1384
        %v1401 = vadd.s32 %v1396, %v1398
        %vm1402 = vc.u32 %v1396, %v1398
        %v1403 = vadd.s32 %v1399, 1
        %v1404 = vsel %vm1402, %v1403, %v1399
        %v1405 = vadd.s32 %v1400, %v1404
        %v1406 = vadd.s32 %v1405, 536870912
        %v1407 = vshrl.u32 %v1406, 30
        %v1408 = vshll.u32 %v1407, 30
        %v1409 = vsub.s32 %v1405, %v1408
        %vm1410 = vcmp.lt.s32.totalorder %v1409, 0
        %v1411 = vsub.s32 0, %v1409
        %v1412 = vsel %vm1410, %v1411, %v1409
        %v1413 = vclz %v1412
        %v1414 = vsub.s32 %v1413, 2
        %vm1415 = vcmp.gt.s32.totalorder 0, %v1414
        %v1416 = vsel %vm1415, 0, %v1414
        %v1417 = vsub.s32 32, %v1416
        %v1418 = vshll.u32 %v1409, %v1416
        %v1419 = vshrl.u32 %v1401, %v1417
        %v1420 = vor.u32 %v1418, %v1419
        %v1421 = vsub.s32 4294967266, %v1416
        %v1422 = vadd.s32 %v1421, 127
        %v1423 = vshll.u32 %v1422, 23
        %v1424 = vor.u32 4788187, %v1423
        %v1425 = vand.u32 2147483647, %v1424
        %v1427 = vcvt.s32.f32 %v1420
        %v1428 = vmul.f32 %v1427, %v1425
        %v1429 = vxor.u32 %v1428, 2147483648
        %v1430 = vsel %vm1347, %v1429, %v1428
        %v1431 = vsub.s32 4, %v1407
        %v1432 = vsel %vm1347, %v1431, %v1407
        %v1433 = vsel %vm1346, %v402, %v1430
        %v1434 = vsel %vm1346, 0, %v1432
        %v1435 = vcosq.f32.pop %v1433
        %v1436 = vsinq.f32.pop %v1433
        %vm1437 = vweird.f32 %v402
        %v1438 = vadd.s32 %v1434, 3
        %v1439 = vand.u32 %v1438, 3
        %vm1440 = vcmp.lt.s32.totalorder %v1439, 2
        %vm1441 = vcmp.eq.s32.totalorder %v1439, 0
        %v1442 = vxor.u32 %v1436, 2147483648
        %v1443 = vsel %vm1441, %v1435, %v1442
        %vm1444 = vcmp.eq.s32.totalorder %v1439, 2
        %v1445 = vxor.u32 %v1435, 2147483648
        %v1446 = vsel %vm1444, %v1445, %v1436
        %v1447 = vsel %vm1440, %v1443, %v1446
        %v1448 = vsel %vm1437, nan, %v1447
        %v1449 = vand.u32 2147483647, %v403
        %vm1450 = vcmp.le.f32.partialorder %v1449, 0.7853982
        %vm1451 = vcmp.lt.s32.totalorder %v403, 0
        %v1452 = vand.u32 %v403, 2139095040
        %v1453 = vshrl.u32 %v1452, 23
        %v1454 = vsub.s32 %v1453, 127
        %v1455 = vand.u32 2147483647, %v403
        %v1456 = vand.u32 %v1455, 8388607
        %v1457 = vor.u32 %v1456, 8388608
        %v1458 = vsub.s32 0, %v1457
        %v1459 = vadd.s32 %v1454, 1
        %vm1460 = vcmp.gt.s32.totalorder %v1459, 0
        %v1461 = vsel %vm1460, %v1459, 0
        %v1462 = vshrl.u32 %v1461, 5
        %v1463 = vand.u32 %v1461, 31
        %v1464 = vsub.s32 32, %v1463
        %v1465 = vshrl.u32 683565275, %v1464
        %v1466 = vshll.u32 683565275, %v1463
        %v1467 = vshrl.u32 2475754826, %v1464
        %v1468 = vor.u32 %v1466, %v1467
        %v1469 = vshll.u32 2475754826, %v1463
        %v1470 = vshrl.u32 2131351028, %v1464
        %v1471 = vor.u32 %v1469, %v1470
        %v1472 = vshll.u32 2131351028, %v1463
        %v1473 = vshrl.u32 2102212464, %v1464
        %v1474 = vor.u32 %v1472, %v1473
        %v1475 = vshll.u32 2102212464, %v1463
        %v1476 = vshrl.u32 920167782, %v1464
        %v1477 = vor.u32 %v1475, %v1476
        %v1478 = vshll.u32 920167782, %v1463
        %v1479 = vshrl.u32 1326507024, %v1464
        %v1480 = vor.u32 %v1478, %v1479
        %vm1481 = vcmp.lt.s32.totalorder %v1462, 1
        %vm1482 = vcmp.lt.s32.totalorder %v1462, 2
        %vm1483 = vcmp.lt.s32.totalorder %v1462, 3
        %vm1484 = vcmp.lt.s32.totalorder %v1462, 4
        %v1485 = vsel %vm1481, %v1465, %v1468
        %v1486 = vsel %vm1484, %v1474, 2102212464
        %v1487 = vsel %vm1483, %v1471, %v1486
        %v1488 = vsel %vm1482, %v1485, %v1487
        %v1489 = vsel %vm1481, %v1468, %v1471
        %v1490 = vsel %vm1484, %v1477, 920167782
        %v1491 = vsel %vm1483, %v1474, %v1490
        %v1492 = vsel %vm1482, %v1489, %v1491
        %v1493 = vsel %vm1481, %v1471, %v1474
        %v1494 = vsel %vm1484, %v1480, 1326507024
        %v1495 = vsel %vm1483, %v1477, %v1494
        %v1496 = vsel %vm1482, %v1493, %v1495
        %v1497 = vshll.u32 %v1457, 8
        %v1498 = vmul.u32.u64.compose %v1497, %v1496
        %v1499 = vextract.low.u32 %v1498
        %v1500 = vextract.high.u32 %v1498
        %v1501 = vmul.u32.u64.compose %v1497, %v1492
        %v1502 = vextract.low.u32 %v1501
        %v1503 = vextract.high.u32 %v1501
        %v1504 = vmul.u32 %v1497, %v1488
        %v1505 = vadd.s32 %v1500, %v1502
        %vm1506 = vc.u32 %v1500, %v1502
        %v1507 = vadd.s32 %v1503, 1
        %v1508 = vsel %vm1506, %v1507, %v1503
        %v1509 = vadd.s32 %v1504, %v1508
        %v1510 = vadd.s32 %v1509, 536870912
        %v1511 = vshrl.u32 %v1510, 30
        %v1512 = vshll.u32 %v1511, 30
        %v1513 = vsub.s32 %v1509, %v1512
        %vm1514 = vcmp.lt.s32.totalorder %v1513, 0
        %v1515 = vsub.s32 0, %v1513
        %v1516 = vsel %vm1514, %v1515, %v1513
        %v1517 = vclz %v1516
        %v1518 = vsub.s32 %v1517, 2
        %vm1519 = vcmp.gt.s32.totalorder 0, %v1518
        %v1520 = vsel %vm1519, 0, %v1518
        %v1521 = vsub.s32 32, %v1520
        %v1522 = vshll.u32 %v1513, %v1520
        %v1523 = vshrl.u32 %v1505, %v1521
        %v1524 = vor.u32 %v1522, %v1523
        %v1525 = vsub.s32 4294967266, %v1520
        %v1526 = vadd.s32 %v1525, 127
        %v1527 = vshll.u32 %v1526, 23
        %v1528 = vor.u32 4788187, %v1527
        %v1529 = vand.u32 2147483647, %v1528
        %v1531 = vcvt.s32.f32 %v1524
        %v1532 = vmul.f32 %v1531, %v1529
        %v1533 = vxor.u32 %v1532, 2147483648
        %v1534 = vsel %vm1451, %v1533, %v1532
        %v1535 = vsub.s32 4, %v1511
        %v1536 = vsel %vm1451, %v1535, %v1511
        %v1537 = vsel %vm1450, %v403, %v1534
        %v1538 = vsel %vm1450, 0, %v1536
        %v1539 = vcosq.f32.pop %v1537
        %v1540 = vsinq.f32.pop %v1537
        %vm1541 = vweird.f32 %v403
        %v1542 = vadd.s32 %v1538, 3
        %v1543 = vand.u32 %v1542, 3
        %vm1544 = vcmp.lt.s32.totalorder %v1543, 2
        %vm1545 = vcmp.eq.s32.totalorder %v1543, 0
        %v1546 = vxor.u32 %v1540, 2147483648
        %v1547 = vsel %vm1545, %v1539, %v1546
        %vm1548 = vcmp.eq.s32.totalorder %v1543, 2
        %v1549 = vxor.u32 %v1539, 2147483648
        %v1550 = vsel %vm1548, %v1549, %v1540
        %v1551 = vsel %vm1544, %v1547, %v1550
        %v1552 = vsel %vm1541, nan, %v1551
        %v1553 = vand.u32 2147483647, %v404
        %vm1554 = vcmp.le.f32.partialorder %v1553, 0.7853982
        %vm1555 = vcmp.lt.s32.totalorder %v404, 0
        %v1556 = vand.u32 %v404, 2139095040
        %v1557 = vshrl.u32 %v1556, 23
        %v1558 = vsub.s32 %v1557, 127
        %v1559 = vand.u32 2147483647, %v404
        %v1560 = vand.u32 %v1559, 8388607
        %v1561 = vor.u32 %v1560, 8388608
        %v1562 = vsub.s32 0, %v1561
        %v1563 = vadd.s32 %v1558, 1
        %vm1564 = vcmp.gt.s32.totalorder %v1563, 0
        %v1565 = vsel %vm1564, %v1563, 0
        %v1566 = vshrl.u32 %v1565, 5
        %v1567 = vand.u32 %v1565, 31
        %v1568 = vsub.s32 32, %v1567
        %v1569 = vshrl.u32 683565275, %v1568
        %v1570 = vshll.u32 683565275, %v1567
        %v1571 = vshrl.u32 2475754826, %v1568
        %v1572 = vor.u32 %v1570, %v1571
        %v1573 = vshll.u32 2475754826, %v1567
        %v1574 = vshrl.u32 2131351028, %v1568
        %v1575 = vor.u32 %v1573, %v1574
        %v1576 = vshll.u32 2131351028, %v1567
        %v1577 = vshrl.u32 2102212464, %v1568
        %v1578 = vor.u32 %v1576, %v1577
        %v1579 = vshll.u32 2102212464, %v1567
        %v1580 = vshrl.u32 920167782, %v1568
        %v1581 = vor.u32 %v1579, %v1580
        %v1582 = vshll.u32 920167782, %v1567
        %v1583 = vshrl.u32 1326507024, %v1568
        %v1584 = vor.u32 %v1582, %v1583
        %vm1585 = vcmp.lt.s32.totalorder %v1566, 1
        %vm1586 = vcmp.lt.s32.totalorder %v1566, 2
        %vm1587 = vcmp.lt.s32.totalorder %v1566, 3
        %vm1588 = vcmp.lt.s32.totalorder %v1566, 4
        %v1589 = vsel %vm1585, %v1569, %v1572
        %v1590 = vsel %vm1588, %v1578, 2102212464
        %v1591 = vsel %vm1587, %v1575, %v1590
        %v1592 = vsel %vm1586, %v1589, %v1591
        %v1593 = vsel %vm1585, %v1572, %v1575
        %v1594 = vsel %vm1588, %v1581, 920167782
        %v1595 = vsel %vm1587, %v1578, %v1594
        %v1596 = vsel %vm1586, %v1593, %v1595
        %v1597 = vsel %vm1585, %v1575, %v1578
        %v1598 = vsel %vm1588, %v1584, 1326507024
        %v1599 = vsel %vm1587, %v1581, %v1598
        %v1600 = vsel %vm1586, %v1597, %v1599
        %v1601 = vshll.u32 %v1561, 8
        %v1602 = vmul.u32.u64.compose %v1601, %v1600
        %v1603 = vextract.low.u32 %v1602
        %v1604 = vextract.high.u32 %v1602
        %v1605 = vmul.u32.u64.compose %v1601, %v1596
        %v1606 = vextract.low.u32 %v1605
        %v1607 = vextract.high.u32 %v1605
        %v1608 = vmul.u32 %v1601, %v1592
        %v1609 = vadd.s32 %v1604, %v1606
        %vm1610 = vc.u32 %v1604, %v1606
        %v1611 = vadd.s32 %v1607, 1
        %v1612 = vsel %vm1610, %v1611, %v1607
        %v1613 = vadd.s32 %v1608, %v1612
        %v1614 = vadd.s32 %v1613, 536870912
        %v1615 = vshrl.u32 %v1614, 30
        %v1616 = vshll.u32 %v1615, 30
        %v1617 = vsub.s32 %v1613, %v1616
        %vm1618 = vcmp.lt.s32.totalorder %v1617, 0
        %v1619 = vsub.s32 0, %v1617
        %v1620 = vsel %vm1618, %v1619, %v1617
        %v1621 = vclz %v1620
        %v1622 = vsub.s32 %v1621, 2
        %vm1623 = vcmp.gt.s32.totalorder 0, %v1622
        %v1624 = vsel %vm1623, 0, %v1622
        %v1625 = vsub.s32 32, %v1624
        %v1626 = vshll.u32 %v1617, %v1624
        %v1627 = vshrl.u32 %v1609, %v1625
        %v1628 = vor.u32 %v1626, %v1627
        %v1629 = vsub.s32 4294967266, %v1624
        %v1630 = vadd.s32 %v1629, 127
        %v1631 = vshll.u32 %v1630, 23
        %v1632 = vor.u32 4788187, %v1631
        %v1633 = vand.u32 2147483647, %v1632
        %v1635 = vcvt.s32.f32 %v1628
        %v1636 = vmul.f32 %v1635, %v1633
        %v1637 = vxor.u32 %v1636, 2147483648
        %v1638 = vsel %vm1555, %v1637, %v1636
        %v1639 = vsub.s32 4, %v1615
        %v1640 = vsel %vm1555, %v1639, %v1615
        %v1641 = vsel %vm1554, %v404, %v1638
        %v1642 = vsel %vm1554, 0, %v1640
        %v1643 = vcosq.f32.pop %v1641
        %v1644 = vsinq.f32.pop %v1641
        %vm1645 = vweird.f32 %v404
        %v1646 = vadd.s32 %v1642, 3
        %v1647 = vand.u32 %v1646, 3
        %vm1648 = vcmp.lt.s32.totalorder %v1647, 2
        %vm1649 = vcmp.eq.s32.totalorder %v1647, 0
        %v1650 = vxor.u32 %v1644, 2147483648
        %v1651 = vsel %vm1649, %v1643, %v1650
        %vm1652 = vcmp.eq.s32.totalorder %v1647, 2
        %v1653 = vxor.u32 %v1643, 2147483648
        %v1654 = vsel %vm1652, %v1653, %v1644
        %v1655 = vsel %vm1648, %v1651, %v1654
        %v1656 = vsel %vm1645, nan, %v1655
        %v1657 = vand.u32 2147483647, %v405
        %vm1658 = vcmp.le.f32.partialorder %v1657, 0.7853982
        %vm1659 = vcmp.lt.s32.totalorder %v405, 0
        %v1660 = vand.u32 %v405, 2139095040
        %v1661 = vshrl.u32 %v1660, 23
        %v1662 = vsub.s32 %v1661, 127
        %v1663 = vand.u32 2147483647, %v405
        %v1664 = vand.u32 %v1663, 8388607
        %v1665 = vor.u32 %v1664, 8388608
        %v1666 = vsub.s32 0, %v1665
        %v1667 = vadd.s32 %v1662, 1
        %vm1668 = vcmp.gt.s32.totalorder %v1667, 0
        %v1669 = vsel %vm1668, %v1667, 0
        %v1670 = vshrl.u32 %v1669, 5
        %v1671 = vand.u32 %v1669, 31
        %v1672 = vsub.s32 32, %v1671
        %v1673 = vshrl.u32 683565275, %v1672
        %v1674 = vshll.u32 683565275, %v1671
        %v1675 = vshrl.u32 2475754826, %v1672
        %v1676 = vor.u32 %v1674, %v1675
        %v1677 = vshll.u32 2475754826, %v1671
        %v1678 = vshrl.u32 2131351028, %v1672
        %v1679 = vor.u32 %v1677, %v1678
        %v1680 = vshll.u32 2131351028, %v1671
        %v1681 = vshrl.u32 2102212464, %v1672
        %v1682 = vor.u32 %v1680, %v1681
        %v1683 = vshll.u32 2102212464, %v1671
        %v1684 = vshrl.u32 920167782, %v1672
        %v1685 = vor.u32 %v1683, %v1684
        %v1686 = vshll.u32 920167782, %v1671
        %v1687 = vshrl.u32 1326507024, %v1672
        %v1688 = vor.u32 %v1686, %v1687
        %vm1689 = vcmp.lt.s32.totalorder %v1670, 1
        %vm1690 = vcmp.lt.s32.totalorder %v1670, 2
        %vm1691 = vcmp.lt.s32.totalorder %v1670, 3
        %vm1692 = vcmp.lt.s32.totalorder %v1670, 4
        %v1693 = vsel %vm1689, %v1673, %v1676
        %v1694 = vsel %vm1692, %v1682, 2102212464
        %v1695 = vsel %vm1691, %v1679, %v1694
        %v1696 = vsel %vm1690, %v1693, %v1695
        %v1697 = vsel %vm1689, %v1676, %v1679
        %v1698 = vsel %vm1692, %v1685, 920167782
        %v1699 = vsel %vm1691, %v1682, %v1698
        %v1700 = vsel %vm1690, %v1697, %v1699
        %v1701 = vsel %vm1689, %v1679, %v1682
        %v1702 = vsel %vm1692, %v1688, 1326507024
        %v1703 = vsel %vm1691, %v1685, %v1702
        %v1704 = vsel %vm1690, %v1701, %v1703
        %v1705 = vshll.u32 %v1665, 8
        %v1706 = vmul.u32.u64.compose %v1705, %v1704
        %v1707 = vextract.low.u32 %v1706
        %v1708 = vextract.high.u32 %v1706
        %v1709 = vmul.u32.u64.compose %v1705, %v1700
        %v1710 = vextract.low.u32 %v1709
        %v1711 = vextract.high.u32 %v1709
        %v1712 = vmul.u32 %v1705, %v1696
        %v1713 = vadd.s32 %v1708, %v1710
        %vm1714 = vc.u32 %v1708, %v1710
        %v1715 = vadd.s32 %v1711, 1
        %v1716 = vsel %vm1714, %v1715, %v1711
        %v1717 = vadd.s32 %v1712, %v1716
        %v1718 = vadd.s32 %v1717, 536870912
        %v1719 = vshrl.u32 %v1718, 30
        %v1720 = vshll.u32 %v1719, 30
        %v1721 = vsub.s32 %v1717, %v1720
        %vm1722 = vcmp.lt.s32.totalorder %v1721, 0
        %v1723 = vsub.s32 0, %v1721
        %v1724 = vsel %vm1722, %v1723, %v1721
        %v1725 = vclz %v1724
        %v1726 = vsub.s32 %v1725, 2
        %vm1727 = vcmp.gt.s32.totalorder 0, %v1726
        %v1728 = vsel %vm1727, 0, %v1726
        %v1729 = vsub.s32 32, %v1728
        %v1730 = vshll.u32 %v1721, %v1728
        %v1731 = vshrl.u32 %v1713, %v1729
        %v1732 = vor.u32 %v1730, %v1731
        %v1733 = vsub.s32 4294967266, %v1728
        %v1734 = vadd.s32 %v1733, 127
        %v1735 = vshll.u32 %v1734, 23
        %v1736 = vor.u32 4788187, %v1735
        %v1737 = vand.u32 2147483647, %v1736
        %v1739 = vcvt.s32.f32 %v1732
        %v1740 = vmul.f32 %v1739, %v1737
        %v1741 = vxor.u32 %v1740, 2147483648
        %v1742 = vsel %vm1659, %v1741, %v1740
        %v1743 = vsub.s32 4, %v1719
        %v1744 = vsel %vm1659, %v1743, %v1719
        %v1745 = vsel %vm1658, %v405, %v1742
        %v1746 = vsel %vm1658, 0, %v1744
        %v1747 = vcosq.f32.pop %v1745
        %v1748 = vsinq.f32.pop %v1745
        %vm1749 = vweird.f32 %v405
        %v1750 = vadd.s32 %v1746, 3
        %v1751 = vand.u32 %v1750, 3
        %vm1752 = vcmp.lt.s32.totalorder %v1751, 2
        %vm1753 = vcmp.eq.s32.totalorder %v1751, 0
        %v1754 = vxor.u32 %v1748, 2147483648
        %v1755 = vsel %vm1753, %v1747, %v1754
        %vm1756 = vcmp.eq.s32.totalorder %v1751, 2
        %v1757 = vxor.u32 %v1747, 2147483648
        %v1758 = vsel %vm1756, %v1757, %v1748
        %v1759 = vsel %vm1752, %v1755, %v1758
        %v1760 = vsel %vm1749, nan, %v1759
        %v1761 = vand.u32 2147483647, %v406
        %vm1762 = vcmp.le.f32.partialorder %v1761, 0.7853982
        %vm1763 = vcmp.lt.s32.totalorder %v406, 0
        %v1764 = vand.u32 %v406, 2139095040
        %v1765 = vshrl.u32 %v1764, 23
        %v1766 = vsub.s32 %v1765, 127
        %v1767 = vand.u32 2147483647, %v406
        %v1768 = vand.u32 %v1767, 8388607
        %v1769 = vor.u32 %v1768, 8388608
        %v1770 = vsub.s32 0, %v1769
        %v1771 = vadd.s32 %v1766, 1
        %vm1772 = vcmp.gt.s32.totalorder %v1771, 0
        %v1773 = vsel %vm1772, %v1771, 0
        %v1774 = vshrl.u32 %v1773, 5
        %v1775 = vand.u32 %v1773, 31
        %v1776 = vsub.s32 32, %v1775
        %v1777 = vshrl.u32 683565275, %v1776
        %v1778 = vshll.u32 683565275, %v1775
        %v1779 = vshrl.u32 2475754826, %v1776
        %v1780 = vor.u32 %v1778, %v1779
        %v1781 = vshll.u32 2475754826, %v1775
        %v1782 = vshrl.u32 2131351028, %v1776
        %v1783 = vor.u32 %v1781, %v1782
        %v1784 = vshll.u32 2131351028, %v1775
        %v1785 = vshrl.u32 2102212464, %v1776
        %v1786 = vor.u32 %v1784, %v1785
        %v1787 = vshll.u32 2102212464, %v1775
        %v1788 = vshrl.u32 920167782, %v1776
        %v1789 = vor.u32 %v1787, %v1788
        %v1790 = vshll.u32 920167782, %v1775
        %v1791 = vshrl.u32 1326507024, %v1776
        %v1792 = vor.u32 %v1790, %v1791
        %vm1793 = vcmp.lt.s32.totalorder %v1774, 1
        %vm1794 = vcmp.lt.s32.totalorder %v1774, 2
        %vm1795 = vcmp.lt.s32.totalorder %v1774, 3
        %vm1796 = vcmp.lt.s32.totalorder %v1774, 4
        %v1797 = vsel %vm1793, %v1777, %v1780
        %v1798 = vsel %vm1796, %v1786, 2102212464
        %v1799 = vsel %vm1795, %v1783, %v1798
        %v1800 = vsel %vm1794, %v1797, %v1799
        %v1801 = vsel %vm1793, %v1780, %v1783
        %v1802 = vsel %vm1796, %v1789, 920167782
        %v1803 = vsel %vm1795, %v1786, %v1802
        %v1804 = vsel %vm1794, %v1801, %v1803
        %v1805 = vsel %vm1793, %v1783, %v1786
        %v1806 = vsel %vm1796, %v1792, 1326507024
        %v1807 = vsel %vm1795, %v1789, %v1806
        %v1808 = vsel %vm1794, %v1805, %v1807
        %v1809 = vshll.u32 %v1769, 8
        %v1810 = vmul.u32.u64.compose %v1809, %v1808
        %v1811 = vextract.low.u32 %v1810
        %v1812 = vextract.high.u32 %v1810
        %v1813 = vmul.u32.u64.compose %v1809, %v1804
        %v1814 = vextract.low.u32 %v1813
        %v1815 = vextract.high.u32 %v1813
        %v1816 = vmul.u32 %v1809, %v1800
        %v1817 = vadd.s32 %v1812, %v1814
        %vm1818 = vc.u32 %v1812, %v1814
        %v1819 = vadd.s32 %v1815, 1
        %v1820 = vsel %vm1818, %v1819, %v1815
        %v1821 = vadd.s32 %v1816, %v1820
        %v1822 = vadd.s32 %v1821, 536870912
        %v1823 = vshrl.u32 %v1822, 30
        %v1824 = vshll.u32 %v1823, 30
        %v1825 = vsub.s32 %v1821, %v1824
        %vm1826 = vcmp.lt.s32.totalorder %v1825, 0
        %v1827 = vsub.s32 0, %v1825
        %v1828 = vsel %vm1826, %v1827, %v1825
        %v1829 = vclz %v1828
        %v1830 = vsub.s32 %v1829, 2
        %vm1831 = vcmp.gt.s32.totalorder 0, %v1830
        %v1832 = vsel %vm1831, 0, %v1830
        %v1833 = vsub.s32 32, %v1832
        %v1834 = vshll.u32 %v1825, %v1832
        %v1835 = vshrl.u32 %v1817, %v1833
        %v1836 = vor.u32 %v1834, %v1835
        %v1837 = vsub.s32 4294967266, %v1832
        %v1838 = vadd.s32 %v1837, 127
        %v1839 = vshll.u32 %v1838, 23
        %v1840 = vor.u32 4788187, %v1839
        %v1841 = vand.u32 2147483647, %v1840
        %v1843 = vcvt.s32.f32 %v1836
        %v1844 = vmul.f32 %v1843, %v1841
        %v1845 = vxor.u32 %v1844, 2147483648
        %v1846 = vsel %vm1763, %v1845, %v1844
        %v1847 = vsub.s32 4, %v1823
        %v1848 = vsel %vm1763, %v1847, %v1823
        %v1849 = vsel %vm1762, %v406, %v1846
        %v1850 = vsel %vm1762, 0, %v1848
        %v1851 = vcosq.f32.pop %v1849
        %v1852 = vsinq.f32.pop %v1849
        %vm1853 = vweird.f32 %v406
        %v1854 = vadd.s32 %v1850, 3
        %v1855 = vand.u32 %v1854, 3
        %vm1856 = vcmp.lt.s32.totalorder %v1855, 2
        %vm1857 = vcmp.eq.s32.totalorder %v1855, 0
        %v1858 = vxor.u32 %v1852, 2147483648
        %v1859 = vsel %vm1857, %v1851, %v1858
        %vm1860 = vcmp.eq.s32.totalorder %v1855, 2
        %v1861 = vxor.u32 %v1851, 2147483648
        %v1862 = vsel %vm1860, %v1861, %v1852
        %v1863 = vsel %vm1856, %v1859, %v1862
        %v1864 = vsel %vm1853, nan, %v1863
        %v1865 = vand.u32 2147483647, %v407
        %vm1866 = vcmp.le.f32.partialorder %v1865, 0.7853982
        %vm1867 = vcmp.lt.s32.totalorder %v407, 0
        %v1868 = vand.u32 %v407, 2139095040
        %v1869 = vshrl.u32 %v1868, 23
        %v1870 = vsub.s32 %v1869, 127
        %v1871 = vand.u32 2147483647, %v407
        %v1872 = vand.u32 %v1871, 8388607
        %v1873 = vor.u32 %v1872, 8388608
        %v1874 = vsub.s32 0, %v1873
        %v1875 = vadd.s32 %v1870, 1
        %vm1876 = vcmp.gt.s32.totalorder %v1875, 0
        %v1877 = vsel %vm1876, %v1875, 0
        %v1878 = vshrl.u32 %v1877, 5
        %v1879 = vand.u32 %v1877, 31
        %v1880 = vsub.s32 32, %v1879
        %v1881 = vshrl.u32 683565275, %v1880
        %v1882 = vshll.u32 683565275, %v1879
        %v1883 = vshrl.u32 2475754826, %v1880
        %v1884 = vor.u32 %v1882, %v1883
        %v1885 = vshll.u32 2475754826, %v1879
        %v1886 = vshrl.u32 2131351028, %v1880
        %v1887 = vor.u32 %v1885, %v1886
        %v1888 = vshll.u32 2131351028, %v1879
        %v1889 = vshrl.u32 2102212464, %v1880
        %v1890 = vor.u32 %v1888, %v1889
        %v1891 = vshll.u32 2102212464, %v1879
        %v1892 = vshrl.u32 920167782, %v1880
        %v1893 = vor.u32 %v1891, %v1892
        %v1894 = vshll.u32 920167782, %v1879
        %v1895 = vshrl.u32 1326507024, %v1880
        %v1896 = vor.u32 %v1894, %v1895
        %vm1897 = vcmp.lt.s32.totalorder %v1878, 1
        %vm1898 = vcmp.lt.s32.totalorder %v1878, 2
        %vm1899 = vcmp.lt.s32.totalorder %v1878, 3
        %vm1900 = vcmp.lt.s32.totalorder %v1878, 4
        %v1901 = vsel %vm1897, %v1881, %v1884
        %v1902 = vsel %vm1900, %v1890, 2102212464
        %v1903 = vsel %vm1899, %v1887, %v1902
        %v1904 = vsel %vm1898, %v1901, %v1903
        %v1905 = vsel %vm1897, %v1884, %v1887
        %v1906 = vsel %vm1900, %v1893, 920167782
        %v1907 = vsel %vm1899, %v1890, %v1906
        %v1908 = vsel %vm1898, %v1905, %v1907
        %v1909 = vsel %vm1897, %v1887, %v1890
        %v1910 = vsel %vm1900, %v1896, 1326507024
        %v1911 = vsel %vm1899, %v1893, %v1910
        %v1912 = vsel %vm1898, %v1909, %v1911
        %v1913 = vshll.u32 %v1873, 8
        %v1914 = vmul.u32.u64.compose %v1913, %v1912
        %v1915 = vextract.low.u32 %v1914
        %v1916 = vextract.high.u32 %v1914
        %v1917 = vmul.u32.u64.compose %v1913, %v1908
        %v1918 = vextract.low.u32 %v1917
        %v1919 = vextract.high.u32 %v1917
        %v1920 = vmul.u32 %v1913, %v1904
        %v1921 = vadd.s32 %v1916, %v1918
        %vm1922 = vc.u32 %v1916, %v1918
        %v1923 = vadd.s32 %v1919, 1
        %v1924 = vsel %vm1922, %v1923, %v1919
        %v1925 = vadd.s32 %v1920, %v1924
        %v1926 = vadd.s32 %v1925, 536870912
        %v1927 = vshrl.u32 %v1926, 30
        %v1928 = vshll.u32 %v1927, 30
        %v1929 = vsub.s32 %v1925, %v1928
        %vm1930 = vcmp.lt.s32.totalorder %v1929, 0
        %v1931 = vsub.s32 0, %v1929
        %v1932 = vsel %vm1930, %v1931, %v1929
        %v1933 = vclz %v1932
        %v1934 = vsub.s32 %v1933, 2
        %vm1935 = vcmp.gt.s32.totalorder 0, %v1934
        %v1936 = vsel %vm1935, 0, %v1934
        %v1937 = vsub.s32 32, %v1936
        %v1938 = vshll.u32 %v1929, %v1936
        %v1939 = vshrl.u32 %v1921, %v1937
        %v1940 = vor.u32 %v1938, %v1939
        %v1941 = vsub.s32 4294967266, %v1936
        %v1942 = vadd.s32 %v1941, 127
        %v1943 = vshll.u32 %v1942, 23
        %v1944 = vor.u32 4788187, %v1943
        %v1945 = vand.u32 2147483647, %v1944
        %v1947 = vcvt.s32.f32 %v1940
        %v1948 = vmul.f32 %v1947, %v1945
        %v1949 = vxor.u32 %v1948, 2147483648
        %v1950 = vsel %vm1867, %v1949, %v1948
        %v1951 = vsub.s32 4, %v1927
        %v1952 = vsel %vm1867, %v1951, %v1927
        %v1953 = vsel %vm1866, %v407, %v1950
        %v1954 = vsel %vm1866, 0, %v1952
        %v1955 = vcosq.f32.pop %v1953
        %v1956 = vsinq.f32.pop %v1953
        %vm1957 = vweird.f32 %v407
        %v1958 = vadd.s32 %v1954, 3
        %v1959 = vand.u32 %v1958, 3
        %vm1960 = vcmp.lt.s32.totalorder %v1959, 2
        %vm1961 = vcmp.eq.s32.totalorder %v1959, 0
        %v1962 = vxor.u32 %v1956, 2147483648
        %v1963 = vsel %vm1961, %v1955, %v1962
        %vm1964 = vcmp.eq.s32.totalorder %v1959, 2
        %v1965 = vxor.u32 %v1955, 2147483648
        %v1966 = vsel %vm1964, %v1965, %v1956
        %v1967 = vsel %vm1960, %v1963, %v1966
        %v1968 = vsel %vm1957, nan, %v1967
        %v1969 = vand.u32 2147483647, %v408
        %vm1970 = vcmp.le.f32.partialorder %v1969, 0.7853982
        %vm1971 = vcmp.lt.s32.totalorder %v408, 0
        %v1972 = vand.u32 %v408, 2139095040
        %v1973 = vshrl.u32 %v1972, 23
        %v1974 = vsub.s32 %v1973, 127
        %v1975 = vand.u32 2147483647, %v408
        %v1976 = vand.u32 %v1975, 8388607
        %v1977 = vor.u32 %v1976, 8388608
        %v1978 = vsub.s32 0, %v1977
        %v1979 = vadd.s32 %v1974, 1
        %vm1980 = vcmp.gt.s32.totalorder %v1979, 0
        %v1981 = vsel %vm1980, %v1979, 0
        %v1982 = vshrl.u32 %v1981, 5
        %v1983 = vand.u32 %v1981, 31
        %v1984 = vsub.s32 32, %v1983
        %v1985 = vshrl.u32 683565275, %v1984
        %v1986 = vshll.u32 683565275, %v1983
        %v1987 = vshrl.u32 2475754826, %v1984
        %v1988 = vor.u32 %v1986, %v1987
        %v1989 = vshll.u32 2475754826, %v1983
        %v1990 = vshrl.u32 2131351028, %v1984
        %v1991 = vor.u32 %v1989, %v1990
        %v1992 = vshll.u32 2131351028, %v1983
        %v1993 = vshrl.u32 2102212464, %v1984
        %v1994 = vor.u32 %v1992, %v1993
        %v1995 = vshll.u32 2102212464, %v1983
        %v1996 = vshrl.u32 920167782, %v1984
        %v1997 = vor.u32 %v1995, %v1996
        %v1998 = vshll.u32 920167782, %v1983
        %v1999 = vshrl.u32 1326507024, %v1984
        %v2000 = vor.u32 %v1998, %v1999
        %vm2001 = vcmp.lt.s32.totalorder %v1982, 1
        %vm2002 = vcmp.lt.s32.totalorder %v1982, 2
        %vm2003 = vcmp.lt.s32.totalorder %v1982, 3
        %vm2004 = vcmp.lt.s32.totalorder %v1982, 4
        %v2005 = vsel %vm2001, %v1985, %v1988
        %v2006 = vsel %vm2004, %v1994, 2102212464
        %v2007 = vsel %vm2003, %v1991, %v2006
        %v2008 = vsel %vm2002, %v2005, %v2007
        %v2009 = vsel %vm2001, %v1988, %v1991
        %v2010 = vsel %vm2004, %v1997, 920167782
        %v2011 = vsel %vm2003, %v1994, %v2010
        %v2012 = vsel %vm2002, %v2009, %v2011
        %v2013 = vsel %vm2001, %v1991, %v1994
        %v2014 = vsel %vm2004, %v2000, 1326507024
        %v2015 = vsel %vm2003, %v1997, %v2014
        %v2016 = vsel %vm2002, %v2013, %v2015
        %v2017 = vshll.u32 %v1977, 8
        %v2018 = vmul.u32.u64.compose %v2017, %v2016
        %v2019 = vextract.low.u32 %v2018
        %v2020 = vextract.high.u32 %v2018
        %v2021 = vmul.u32.u64.compose %v2017, %v2012
        %v2022 = vextract.low.u32 %v2021
        %v2023 = vextract.high.u32 %v2021
        %v2024 = vmul.u32 %v2017, %v2008
        %v2025 = vadd.s32 %v2020, %v2022
        %vm2026 = vc.u32 %v2020, %v2022
        %v2027 = vadd.s32 %v2023, 1
        %v2028 = vsel %vm2026, %v2027, %v2023
        %v2029 = vadd.s32 %v2024, %v2028
        %v2030 = vadd.s32 %v2029, 536870912
        %v2031 = vshrl.u32 %v2030, 30
        %v2032 = vshll.u32 %v2031, 30
        %v2033 = vsub.s32 %v2029, %v2032
        %vm2034 = vcmp.lt.s32.totalorder %v2033, 0
        %v2035 = vsub.s32 0, %v2033
        %v2036 = vsel %vm2034, %v2035, %v2033
        %v2037 = vclz %v2036
        %v2038 = vsub.s32 %v2037, 2
        %vm2039 = vcmp.gt.s32.totalorder 0, %v2038
        %v2040 = vsel %vm2039, 0, %v2038
        %v2041 = vsub.s32 32, %v2040
        %v2042 = vshll.u32 %v2033, %v2040
        %v2043 = vshrl.u32 %v2025, %v2041
        %v2044 = vor.u32 %v2042, %v2043
        %v2045 = vsub.s32 4294967266, %v2040
        %v2046 = vadd.s32 %v2045, 127
        %v2047 = vshll.u32 %v2046, 23
        %v2048 = vor.u32 4788187, %v2047
        %v2049 = vand.u32 2147483647, %v2048
        %v2051 = vcvt.s32.f32 %v2044
        %v2052 = vmul.f32 %v2051, %v2049
        %v2053 = vxor.u32 %v2052, 2147483648
        %v2054 = vsel %vm1971, %v2053, %v2052
        %v2055 = vsub.s32 4, %v2031
        %v2056 = vsel %vm1971, %v2055, %v2031
        %v2057 = vsel %vm1970, %v408, %v2054
        %v2058 = vsel %vm1970, 0, %v2056
        %v2059 = vcosq.f32.pop %v2057
        %v2060 = vsinq.f32.pop %v2057
        %vm2061 = vweird.f32 %v408
        %v2062 = vadd.s32 %v2058, 3
        %v2063 = vand.u32 %v2062, 3
        %vm2064 = vcmp.lt.s32.totalorder %v2063, 2
        %vm2065 = vcmp.eq.s32.totalorder %v2063, 0
        %v2066 = vxor.u32 %v2060, 2147483648
        %v2067 = vsel %vm2065, %v2059, %v2066
        %vm2068 = vcmp.eq.s32.totalorder %v2063, 2
        %v2069 = vxor.u32 %v2059, 2147483648
        %v2070 = vsel %vm2068, %v2069, %v2060
        %v2071 = vsel %vm2064, %v2067, %v2070
        %v2072 = vsel %vm2061, nan, %v2071
        %2073 = vst [vmem:[%s164] sm:$0xff] %v512
        %2074 = vst [vmem:[%s164 + $0x8] sm:$0xff] %v616
        %2075 = vst [vmem:[%s164 + $0x10] sm:$0xff] %v720
        %2076 = vst [vmem:[%s164 + $0x18] sm:$0xff] %v824
        %2077 = vst [vmem:[%s164 + $0x20] sm:$0xff] %v928
        %2078 = vst [vmem:[%s164 + $0x28] sm:$0xff] %v1032
        %2079 = vst [vmem:[%s164 + $0x30] sm:$0xff] %v1136
        %2080 = vst [vmem:[%s164 + $0x38] sm:$0xff] %v1240
        %2081 = vst [vmem:[%s164 + $0x40] sm:$0xff] %v1344
        %2082 = vst [vmem:[%s164 + $0x48] sm:$0xff] %v1448
        %2083 = vst [vmem:[%s164 + $0x50] sm:$0xff] %v1552
        %2084 = vst [vmem:[%s164 + $0x58] sm:$0xff] %v1656
        %2085 = vst [vmem:[%s164 + $0x60] sm:$0xff] %v1760
        %2086 = vst [vmem:[%s164 + $0x68] sm:$0xff] %v1864
        %2087 = vst [vmem:[%s164 + $0x70] sm:$0xff] %v1968
        %2088 = vst [vmem:[%s164 + $0x78] sm:$0xff] %v2072
        %s2089 = sand.u32 %s93, 1
        %s2090 = scalar_lea.sflag [#allocation3], %s2089
        %s2091 = sand.u32 %s93, 1
        %s2092 = smul.addr %s2091, 128
        %s2093 = scalar_lea.vmem [#allocation2], %s2092
        // Predicated region
        $region33: #{tpu_custom_call.1} parent=31 // pred_check
          %p2094 = pneg %p103
        $region34: #{tpu_custom_call.1} parent=31 // pred_check_branch
          %2096 = sbr.rel (%p2094) target = $region36
        $region35: #{tpu_custom_call.1} parent=31 // pred_region
          %s2097 = smul.u32 16, %s17
          %s2099 = ssub.s32 2048, 2048
          %2100 = vsyncadd %s2090, %s2099
          %s2101 = smul.addr %s2097, 128
          %s2102 = scalar_lea.hbm %s3, %s2101
          %s2103 = sshll.u32 %s2093, 4
          %s2104 = int_to_ptr.vmem [resolvable:$true] %s2103
          %2109 = dma.vmem_to_hbm [thread:$0]  %s2104, 2048, %s2102, %s2090, 128, 128, 8
        $region36: #{tpu_custom_call.1} parent=31 // pred_fallthru
          _
      $region32: #{tpu_custom_call.1} parent=5 // pred_fallthru
        _
      %p2110 = scmp.le.s32.totalorder 2, %s12
      // Predicated region
      $region37: #{tpu_custom_call.1} parent=5 // pred_check
        %p2111 = pneg %p2110
      $region38: #{tpu_custom_call.1} parent=5 // pred_check_branch
        %2113 = sbr.rel (%p2111) target = $region40
      $region39: #{tpu_custom_call.1} parent=5 // pred_region
        %s2114 = ssub.s32 %s12, 2
        // Predicated region
        $region41: #{tpu_custom_call.1} parent=39 // pred_check
          %p2115 = pneg %p109
        $region42: #{tpu_custom_call.1} parent=39 // pred_check_branch
          %2117 = sbr.rel (%p2115) target = $region44
        $region43: #{tpu_custom_call.1} parent=39 // pred_region
          %s2118 = sand.u32 %s94, 1
          %s2119 = scalar_lea.sflag [#allocation3], %s2118
          %s2120 = sand.u32 %s94, 1
          %s2121 = smul.addr %s2120, 128
          %s2122 = scalar_lea.vmem [#allocation2], %s2121
          %2123 = dma.done %s2119, 2048
        $region44: #{tpu_custom_call.1} parent=39 // pred_fallthru
          _
      $region40: #{tpu_custom_call.1} parent=5 // pred_fallthru
        _
    $region6: #{tpu_custom_call.1} parent=1 // loop_footer
      %s16 = sadd.s32 1, %s12
    $region7: #{tpu_custom_call.1} parent=1 // loop_footer_branch
      %11 = sbr.rel target = $region3
    $region8: #{tpu_custom_call.1} parent=1 // loop_exit
      _
    %2124 = vsyncpa [#allocation3], 1
    %s2125 = scalar_lea.sflag [#allocation3], 1
    %2126 = vsyncpa %s2125, 1

</llo_original>
